<compile_context>
chip_gen: v5e
topology: v5e:2x2
jax: 0.10.0
libtpu: 0.0.40
codegen_flags: <defaults>
</compile_context>

<pallas_src>
import functools

import jax
import jax.numpy as jnp
from jax import lax
from jax.experimental import pallas as pl
from jax.experimental.pallas import tpu as pltpu


# --------------------------- fused GRU + head kernel -------------------------

def _fused_gru_head_kernel(*refs, num_layers, head_writes, H):
    """Fused multi-layer GRU recurrence + linear head (single invocation).

    Ref order (all full-array VMEM refs, no grid):
      gi0                              (T, B, 3H)  layer-0 input gates
                                                   (b_ih0 + [b_hr0|b_hz0|0] folded in)
      layer 0:        whh0 (H, 3H), bhn0 (1, H)
      layers 1..L-1:  wih  (H, 3H), bgi  (1, 3H)   (= b_ih + [b_hr|b_hz|0])
                      whh  (H, 3H), bhn  (1, H)
      head:           w_out (H, O), b_out (1, O)
      output:         o_ref (B, O)
      scratch:        head_buf (B, H) VMEM
    """
    gi0_ref = refs[0]
    idx = 1
    layer_refs = [(None, None, refs[idx], refs[idx + 1])]
    idx += 2
    for _ in range(1, num_layers):
        layer_refs.append((refs[idx], refs[idx + 1], refs[idx + 2], refs[idx + 3]))
        idx += 4
    w_out_ref, b_out_ref = refs[idx], refs[idx + 1]
    o_ref = refs[idx + 2]
    head_buf = refs[idx + 3]

    T, B, _ = gi0_ref.shape

    # Biases are tiny: broadcast them to (B, .) ONCE before the loop.  Weight
    # matrices are deliberately NOT hoisted -- they are re-read from their VMEM
    # refs inside the loop body to keep vreg pressure low across the unrolled
    # time loop.
    bhn_b = []
    bgi_b = []
    for (_, bgi_ref, _, bhn_ref) in layer_refs:
        bhn_b.append(jnp.broadcast_to(bhn_ref[...], (B, H)))
        bgi_b.append(None if bgi_ref is None
                     else jnp.broadcast_to(bgi_ref[...], (B, 3 * H)))

    def gru_cell(gi, h_prev, whh_ref, bhn):
        # One fused (B,H)x(H,3H) MXU dot on the serial h->h path; r/z/n are
        # static lane slices of the 3H-wide result.  PyTorch gate order
        # [r|z|n]; b_hn stays inside the r * (.) term.
        gh = jnp.dot(h_prev, whh_ref[...], preferred_element_type=jnp.float32)
        r = jax.nn.sigmoid(gi[:, 0 * H:1 * H] + gh[:, 0 * H:1 * H])
        z = jax.nn.sigmoid(gi[:, 1 * H:2 * H] + gh[:, 1 * H:2 * H])
        n = jnp.tanh(gi[:, 2 * H:3 * H] + r * (gh[:, 2 * H:3 * H] + bhn))
        return (1.0 - z) * n + z * h_prev

    def step(t, hs):
        hs = list(hs)
        # Layer 0: input projection was hoisted out of the recurrence.
        h = gru_cell(gi0_ref[t], hs[0], layer_refs[0][2], bhn_b[0])
        hs[0] = h
        x_l = h
        # Deeper layers: their input is the recurrent output of the layer below,
        # so their input projection genuinely belongs on the serial path.
        for l in range(1, num_layers):
            wih_ref, _, whh_ref, _ = layer_refs[l]
            gi = (jnp.dot(x_l, wih_ref[...], preferred_element_type=jnp.float32)
                  + bgi_b[l])
            h = gru_cell(gi, hs[l], whh_ref, bhn_b[l])
            hs[l] = h
            x_l = h
        # Capture exactly the rows the PyTorch reshape quirk's head consumes.
        for tt, rows in head_writes:
            @pl.when(t == tt)
            def _(rows=rows, x_l=x_l):
                for j, bb in rows:
                    head_buf[j:j + 1, :] = x_l[bb:bb + 1, :]
        return tuple(hs)

    # h_0 = zeros, matching `x.data.new(...).fill_(0)` in the PyTorch module.
    h0 = tuple(jnp.zeros((B, H), jnp.float32) for _ in range(num_layers))
    lax.fori_loop(0, T, step, h0, unroll=True)

    o_ref[...] = (
        jnp.dot(head_buf[...], w_out_ref[...], preferred_element_type=jnp.float32)
        + b_out_ref[...]
    ).astype(o_ref.dtype)


# ------------------------------ wrapper / forward -----------------------------

@jax.jit
def model_forward(params, x):
    """Reproduces Model.forward(x, hidden=None). x: (B, T, F) float32."""
    B, T, _ = x.shape
    layers = params["gru"]
    num_layers = len(layers)
    H = layers[0]["w_hh_t"].shape[0]
    O = params["w_out_t"].shape[1]
    hp = lax.Precision.HIGHEST

    zeros_h = jnp.zeros((1, H), jnp.float32)

    # Layer-0 input projection hoisted out of the serial recurrence: one
    # lane-dense batched matmul in XLA.  Fold the layer-0 hidden r/z biases in
    # as well (they only ever appear summed with the input gates).
    l0 = layers[0]
    b0 = l0["b_ih"] + jnp.concatenate([l0["b_hh"][:, :2 * H], zeros_h], axis=-1)
    gi0 = jnp.einsum("btf,fg->tbg", x, l0["w_ih_t"], precision=hp) + b0   # (T,B,3H)

    inputs = [gi0, l0["w_hh_t"], l0["b_hh"][:, 2 * H:]]
    for l in range(1, num_layers):
        lp = layers[l]
        bgi = lp["b_ih"] + jnp.concatenate([lp["b_hh"][:, :2 * H], zeros_h], axis=-1)
        inputs += [lp["w_ih_t"], bgi, lp["w_hh_t"], lp["b_hh"][:, 2 * H:]]
    inputs += [params["w_out_t"], params["b_out"].reshape(1, O)]

    # PyTorch quirk: output(B,T,H).reshape(B*T,H) -> linear -> reshape(T,B,O)
    # -> [-1] consumes exactly flat rows (T-1)*B .. T*B-1; flat row r was
    # produced by (batch b = r // T, time t = r % T).  Group needed rows by t.
    by_t = {}
    for j in range(B):
        r = (T - 1) * B + j
        by_t.setdefault(r % T, []).append((j, r // T))
    head_writes = tuple((tt, tuple(rows)) for tt, rows in sorted(by_t.items()))

    kernel = functools.partial(_fused_gru_head_kernel,
                               num_layers=num_layers,
                               head_writes=head_writes,
                               H=H)

    return pl.pallas_call(
        kernel,
        out_shape=jax.ShapeDtypeStruct((B, O), jnp.float32),
        scratch_shapes=[pltpu.VMEM((B, H), jnp.float32)],
    )(*inputs)


# ------------------------------ pure-JAX reference ----------------------------

def _gru_ref_layer(x_tbf, w_ih_t, w_hh_t, b_ih, b_hh):
    T, B, _ = x_tbf.shape
    H = w_hh_t.shape[0]
    hp = lax.Precision.HIGHEST

    def step(h_prev, x_t):
        gi = jnp.dot(x_t, w_ih_t, precision=hp) + b_ih
        gh = jnp.dot(h_prev, w_hh_t, precision=hp) + b_hh
        r = jax.nn.sigmoid(gi[:, :H] + gh[:, :H])
        z = jax.nn.sigmoid(gi[:, H:2 * H] + gh[:, H:2 * H])
        n = jnp.tanh(gi[:, 2 * H:] + r * gh[:, 2 * H:])
        h_new = (1.0 - z) * n + z * h_prev
        return h_new, h_new

    h0 = jnp.zeros((B, H), jnp.float32)
    _, ys = lax.scan(step, h0, x_tbf)
    return ys


def model_forward_ref(params, x):
    B, T, _ = x.shape
    h = jnp.transpose(x, (1, 0, 2))
    for layer in params["gru"]:
        h = _gru_ref_layer(h, layer["w_ih_t"], layer["w_hh_t"],
                           layer["b_ih"][0], layer["b_hh"][0])
    out_bth = jnp.transpose(h, (1, 0, 2))
    H = out_bth.shape[-1]
    flat = out_bth.reshape(-1, H)
    lin = jnp.dot(flat, params["w_out_t"],
                  precision=lax.Precision.HIGHEST) + params["b_out"]
    O = lin.shape[-1]
    return lin.reshape(T, B, O)[-1]


# --------------------------------- param init ---------------------------------

def init_params(key, feature_size, hidden_size, num_layers, output_size):
    """Deterministic uniform(-1/sqrt(H), 1/sqrt(H)) init, like PyTorch."""
    k = 1.0 / jnp.sqrt(hidden_size)
    params = {"gru": []}
    for layer in range(num_layers):
        in_sz = feature_size if layer == 0 else hidden_size
        key, k1, k2, k3, k4 = jax.random.split(key, 5)
        params["gru"].append({
            # stored pre-transposed: (in, 3H) / (H, 3H); gate order [r|z|n]
            "w_ih_t": jax.random.uniform(k1, (in_sz, 3 * hidden_size),
                                         jnp.float32, -k, k),
            "w_hh_t": jax.random.uniform(k2, (hidden_size, 3 * hidden_size),
                                         jnp.float32, -k, k),
            "b_ih": jax.random.uniform(k3, (1, 3 * hidden_size),
                                       jnp.float32, -k, k),
            "b_hh": jax.random.uniform(k4, (1, 3 * hidden_size),
                                       jnp.float32, -k, k),
        })
    key, k5, k6 = jax.random.split(key, 3)
    params["w_out_t"] = jax.random.uniform(k5, (hidden_size, output_size),
                                           jnp.float32, -k, k)
    params["b_out"] = jax.random.uniform(k6, (output_size,),
                                         jnp.float32, -k, k)
    return params


# ------------------------------------ main -------------------------------------

if __name__ == "__main__":
    feature_size, hidden_size, num_layers, output_size = 4, 32, 2, 4
    B, T = 2, 8

    key = jax.random.PRNGKey(0)
    pkey, xkey = jax.random.split(key)
    params = init_params(pkey, feature_size, hidden_size, num_layers, output_size)
    x = jax.random.normal(xkey, (B, T, feature_size), jnp.float32)

    out = jax.block_until_ready(model_forward(params, x))
    assert out.shape == (B, output_size), out.shape

    ref = jax.block_until_ready(model_forward_ref(params, x))
    assert jnp.allclose(out, ref, atol=2e-3, rtol=2e-3), (out, ref)

    print("KERNEL_OK")
</pallas_src>

<mosaic_0001>
module attributes {stable_mosaic.version = 11 : i64} {
  func.func @_fused_gru_head_kernel(%arg0: memref<8x2x96xf32, #tpu.memory_space<vmem>>, %arg1: memref<32x96xf32, #tpu.memory_space<vmem>>, %arg2: memref<1x32xf32, #tpu.memory_space<vmem>>, %arg3: memref<32x96xf32, #tpu.memory_space<vmem>>, %arg4: memref<1x96xf32, #tpu.memory_space<vmem>>, %arg5: memref<32x96xf32, #tpu.memory_space<vmem>>, %arg6: memref<1x32xf32, #tpu.memory_space<vmem>>, %arg7: memref<32x4xf32, #tpu.memory_space<vmem>>, %arg8: memref<1x4xf32, #tpu.memory_space<vmem>>, %arg9: memref<2x4xf32, #tpu.memory_space<vmem>>, %arg10: memref<2x32xf32, #tpu.memory_space<vmem>>) attributes {dimension_semantics = [], scalar_prefetch = 0 : i64, scratch_operands = 1 : i64, tpu.core_type = #tpu.core_type<tc>} {
    %c0 = arith.constant 0 : index
    %c0_0 = arith.constant 0 : index
    %0 = vector.load %arg2[%c0, %c0_0] : memref<1x32xf32, #tpu.memory_space<vmem>>, vector<1x32xf32>
    %1 = vector.shape_cast %0 : vector<1x32xf32> to vector<1x32xf32>
    %2 = vector.broadcast %1 : vector<1x32xf32> to vector<2x32xf32>
    %c0_1 = arith.constant 0 : index
    %c0_2 = arith.constant 0 : index
    %3 = vector.load %arg6[%c0_1, %c0_2] : memref<1x32xf32, #tpu.memory_space<vmem>>, vector<1x32xf32>
    %4 = vector.shape_cast %3 : vector<1x32xf32> to vector<1x32xf32>
    %5 = vector.broadcast %4 : vector<1x32xf32> to vector<2x32xf32>
    %c0_3 = arith.constant 0 : index
    %c0_4 = arith.constant 0 : index
    %6 = vector.load %arg4[%c0_3, %c0_4] : memref<1x96xf32, #tpu.memory_space<vmem>>, vector<1x96xf32>
    %7 = vector.shape_cast %6 : vector<1x96xf32> to vector<1x96xf32>
    %8 = vector.broadcast %7 : vector<1x96xf32> to vector<2x96xf32>
    %cst = arith.constant 0.000000e+00 : f32
    %9 = vector.broadcast %cst : f32 to vector<2x32xf32>
    %cst_5 = arith.constant 0.000000e+00 : f32
    %10 = vector.broadcast %cst_5 : f32 to vector<2x32xf32>
    %c0_i32 = arith.constant 0 : i32
    %11 = arith.index_cast %c0_i32 : i32 to index
    %c0_6 = arith.constant 0 : index
    %c0_7 = arith.constant 0 : index
    %12 = vector.load %arg0[%11, %c0_6, %c0_7] : memref<8x2x96xf32, #tpu.memory_space<vmem>>, vector<1x2x96xf32>
    %13 = vector.shape_cast %12 : vector<1x2x96xf32> to vector<2x96xf32>
    %c0_8 = arith.constant 0 : index
    %c0_9 = arith.constant 0 : index
    %14 = vector.load %arg1[%c0_8, %c0_9] : memref<32x96xf32, #tpu.memory_space<vmem>>, vector<32x96xf32>
    %cst_10 = arith.constant dense<0.000000e+00> : vector<2x96xf32>
    %15 = tpu.matmul %9, %14, %cst_10 {dimension_numbers = #tpu.dot_dimension_numbers<[1], [0], [0], [1], [0, 0, 1, 1], [], []>} : vector<2x32xf32>, vector<32x96xf32>, vector<2x96xf32> -> vector<2x96xf32>
    %16 = vector.extract_strided_slice %13 {offsets = [0, 0], sizes = [2, 32], strides = [1, 1]} : vector<2x96xf32> to vector<2x32xf32>
    %17 = vector.extract_strided_slice %15 {offsets = [0, 0], sizes = [2, 32], strides = [1, 1]} : vector<2x96xf32> to vector<2x32xf32>
    %18 = arith.addf %16, %17 : vector<2x32xf32>
    %19 = arith.negf %18 : vector<2x32xf32>
    %20 = math.exp %19 : vector<2x32xf32>
    %cst_11 = arith.constant 1.000000e+00 : f32
    %21 = vector.broadcast %cst_11 : f32 to vector<2x32xf32>
    %22 = arith.addf %21, %20 : vector<2x32xf32>
    %23 = arith.divf %21, %22 : vector<2x32xf32>
    %24 = vector.extract_strided_slice %13 {offsets = [0, 32], sizes = [2, 32], strides = [1, 1]} : vector<2x96xf32> to vector<2x32xf32>
    %25 = vector.extract_strided_slice %15 {offsets = [0, 32], sizes = [2, 32], strides = [1, 1]} : vector<2x96xf32> to vector<2x32xf32>
    %26 = arith.addf %24, %25 : vector<2x32xf32>
    %27 = arith.negf %26 : vector<2x32xf32>
    %28 = math.exp %27 : vector<2x32xf32>
    %cst_12 = arith.constant 1.000000e+00 : f32
    %29 = vector.broadcast %cst_12 : f32 to vector<2x32xf32>
    %30 = arith.addf %29, %28 : vector<2x32xf32>
    %31 = arith.divf %29, %30 : vector<2x32xf32>
    %32 = vector.extract_strided_slice %13 {offsets = [0, 64], sizes = [2, 32], strides = [1, 1]} : vector<2x96xf32> to vector<2x32xf32>
    %33 = vector.extract_strided_slice %15 {offsets = [0, 64], sizes = [2, 32], strides = [1, 1]} : vector<2x96xf32> to vector<2x32xf32>
    %34 = arith.addf %33, %2 : vector<2x32xf32>
    %35 = arith.mulf %23, %34 : vector<2x32xf32>
    %36 = arith.addf %32, %35 : vector<2x32xf32>
    %37 = math.tanh %36 : vector<2x32xf32>
    %cst_13 = arith.constant 1.000000e+00 : f32
    %38 = vector.broadcast %cst_13 : f32 to vector<2x32xf32>
    %39 = arith.subf %38, %31 : vector<2x32xf32>
    %40 = arith.mulf %39, %37 : vector<2x32xf32>
    %41 = arith.mulf %31, %9 : vector<2x32xf32>
    %42 = arith.addf %40, %41 : vector<2x32xf32>
    %c0_14 = arith.constant 0 : index
    %c0_15 = arith.constant 0 : index
    %43 = vector.load %arg3[%c0_14, %c0_15] : memref<32x96xf32, #tpu.memory_space<vmem>>, vector<32x96xf32>
    %cst_16 = arith.constant dense<0.000000e+00> : vector<2x96xf32>
    %44 = tpu.matmul %42, %43, %cst_16 {dimension_numbers = #tpu.dot_dimension_numbers<[1], [0], [0], [1], [0, 0, 1, 1], [], []>} : vector<2x32xf32>, vector<32x96xf32>, vector<2x96xf32> -> vector<2x96xf32>
    %45 = arith.addf %44, %8 : vector<2x96xf32>
    %c0_17 = arith.constant 0 : index
    %c0_18 = arith.constant 0 : index
    %46 = vector.load %arg5[%c0_17, %c0_18] : memref<32x96xf32, #tpu.memory_space<vmem>>, vector<32x96xf32>
    %cst_19 = arith.constant dense<0.000000e+00> : vector<2x96xf32>
    %47 = tpu.matmul %10, %46, %cst_19 {dimension_numbers = #tpu.dot_dimension_numbers<[1], [0], [0], [1], [0, 0, 1, 1], [], []>} : vector<2x32xf32>, vector<32x96xf32>, vector<2x96xf32> -> vector<2x96xf32>
    %48 = vector.extract_strided_slice %45 {offsets = [0, 0], sizes = [2, 32], strides = [1, 1]} : vector<2x96xf32> to vector<2x32xf32>
    %49 = vector.extract_strided_slice %47 {offsets = [0, 0], sizes = [2, 32], strides = [1, 1]} : vector<2x96xf32> to vector<2x32xf32>
    %50 = arith.addf %48, %49 : vector<2x32xf32>
    %51 = arith.negf %50 : vector<2x32xf32>
    %52 = math.exp %51 : vector<2x32xf32>
    %cst_20 = arith.constant 1.000000e+00 : f32
    %53 = vector.broadcast %cst_20 : f32 to vector<2x32xf32>
    %54 = arith.addf %53, %52 : vector<2x32xf32>
    %55 = arith.divf %53, %54 : vector<2x32xf32>
    %56 = vector.extract_strided_slice %45 {offsets = [0, 32], sizes = [2, 32], strides = [1, 1]} : vector<2x96xf32> to vector<2x32xf32>
    %57 = vector.extract_strided_slice %47 {offsets = [0, 32], sizes = [2, 32], strides = [1, 1]} : vector<2x96xf32> to vector<2x32xf32>
    %58 = arith.addf %56, %57 : vector<2x32xf32>
    %59 = arith.negf %58 : vector<2x32xf32>
    %60 = math.exp %59 : vector<2x32xf32>
    %cst_21 = arith.constant 1.000000e+00 : f32
    %61 = vector.broadcast %cst_21 : f32 to vector<2x32xf32>
    %62 = arith.addf %61, %60 : vector<2x32xf32>
    %63 = arith.divf %61, %62 : vector<2x32xf32>
    %64 = vector.extract_strided_slice %45 {offsets = [0, 64], sizes = [2, 32], strides = [1, 1]} : vector<2x96xf32> to vector<2x32xf32>
    %65 = vector.extract_strided_slice %47 {offsets = [0, 64], sizes = [2, 32], strides = [1, 1]} : vector<2x96xf32> to vector<2x32xf32>
    %66 = arith.addf %65, %5 : vector<2x32xf32>
    %67 = arith.mulf %55, %66 : vector<2x32xf32>
    %68 = arith.addf %64, %67 : vector<2x32xf32>
    %69 = math.tanh %68 : vector<2x32xf32>
    %cst_22 = arith.constant 1.000000e+00 : f32
    %70 = vector.broadcast %cst_22 : f32 to vector<2x32xf32>
    %71 = arith.subf %70, %63 : vector<2x32xf32>
    %72 = arith.mulf %71, %69 : vector<2x32xf32>
    %73 = arith.mulf %63, %10 : vector<2x32xf32>
    %74 = arith.addf %72, %73 : vector<2x32xf32>
    %c6_i32 = arith.constant 6 : i32
    %75 = arith.cmpi eq, %c0_i32, %c6_i32 : i32
    %76 = arith.extui %75 : i1 to i32
    %c0_i32_23 = arith.constant 0 : i32
    %77 = arith.cmpi ne, %76, %c0_i32_23 : i32
    scf.if %77 {
      %578 = vector.extract_strided_slice %74 {offsets = [1, 0], sizes = [1, 32], strides = [1, 1]} : vector<2x32xf32> to vector<1x32xf32>
      %c0_183 = arith.constant 0 : index
      %c0_184 = arith.constant 0 : index
      %579 = vector.load %arg10[%c0_183, %c0_184] : memref<2x32xf32, #tpu.memory_space<vmem>>, vector<1x32xf32>
      tpu.vector_store %arg10[%c0_183, %c0_184], %578 {strides = array<i32>} : memref<2x32xf32, #tpu.memory_space<vmem>>, vector<1x32xf32>,
    } else {
    }
    %c7_i32 = arith.constant 7 : i32
    %78 = arith.cmpi eq, %c0_i32, %c7_i32 : i32
    %79 = arith.extui %78 : i1 to i32
    %c0_i32_24 = arith.constant 0 : i32
    %80 = arith.cmpi ne, %79, %c0_i32_24 : i32
    scf.if %80 {
      %578 = vector.extract_strided_slice %74 {offsets = [1, 0], sizes = [1, 32], strides = [1, 1]} : vector<2x32xf32> to vector<1x32xf32>
      %c1 = arith.constant 1 : index
      %c0_183 = arith.constant 0 : index
      %579 = vector.load %arg10[%c1, %c0_183] : memref<2x32xf32, #tpu.memory_space<vmem>>, vector<1x32xf32>
      tpu.vector_store %arg10[%c1, %c0_183], %578 {strides = array<i32>} : memref<2x32xf32, #tpu.memory_space<vmem>>, vector<1x32xf32>,
    } else {
    }
    %c1_i32 = arith.constant 1 : i32
    %81 = arith.index_cast %c1_i32 : i32 to index
    %c0_25 = arith.constant 0 : index
    %c0_26 = arith.constant 0 : index
    %82 = vector.load %arg0[%81, %c0_25, %c0_26] : memref<8x2x96xf32, #tpu.memory_space<vmem>>, vector<1x2x96xf32>
    %83 = vector.shape_cast %82 : vector<1x2x96xf32> to vector<2x96xf32>
    %c0_27 = arith.constant 0 : index
    %c0_28 = arith.constant 0 : index
    %84 = vector.load %arg1[%c0_27, %c0_28] : memref<32x96xf32, #tpu.memory_space<vmem>>, vector<32x96xf32>
    %cst_29 = arith.constant dense<0.000000e+00> : vector<2x96xf32>
    %85 = tpu.matmul %42, %84, %cst_29 {dimension_numbers = #tpu.dot_dimension_numbers<[1], [0], [0], [1], [0, 0, 1, 1], [], []>} : vector<2x32xf32>, vector<32x96xf32>, vector<2x96xf32> -> vector<2x96xf32>
    %86 = vector.extract_strided_slice %83 {offsets = [0, 0], sizes = [2, 32], strides = [1, 1]} : vector<2x96xf32> to vector<2x32xf32>
    %87 = vector.extract_strided_slice %85 {offsets = [0, 0], sizes = [2, 32], strides = [1, 1]} : vector<2x96xf32> to vector<2x32xf32>
    %88 = arith.addf %86, %87 : vector<2x32xf32>
    %89 = arith.negf %88 : vector<2x32xf32>
    %90 = math.exp %89 : vector<2x32xf32>
    %cst_30 = arith.constant 1.000000e+00 : f32
    %91 = vector.broadcast %cst_30 : f32 to vector<2x32xf32>
    %92 = arith.addf %91, %90 : vector<2x32xf32>
    %93 = arith.divf %91, %92 : vector<2x32xf32>
    %94 = vector.extract_strided_slice %83 {offsets = [0, 32], sizes = [2, 32], strides = [1, 1]} : vector<2x96xf32> to vector<2x32xf32>
    %95 = vector.extract_strided_slice %85 {offsets = [0, 32], sizes = [2, 32], strides = [1, 1]} : vector<2x96xf32> to vector<2x32xf32>
    %96 = arith.addf %94, %95 : vector<2x32xf32>
    %97 = arith.negf %96 : vector<2x32xf32>
    %98 = math.exp %97 : vector<2x32xf32>
    %cst_31 = arith.constant 1.000000e+00 : f32
    %99 = vector.broadcast %cst_31 : f32 to vector<2x32xf32>
    %100 = arith.addf %99, %98 : vector<2x32xf32>
    %101 = arith.divf %99, %100 : vector<2x32xf32>
    %102 = vector.extract_strided_slice %83 {offsets = [0, 64], sizes = [2, 32], strides = [1, 1]} : vector<2x96xf32> to vector<2x32xf32>
    %103 = vector.extract_strided_slice %85 {offsets = [0, 64], sizes = [2, 32], strides = [1, 1]} : vector<2x96xf32> to vector<2x32xf32>
    %104 = arith.addf %103, %2 : vector<2x32xf32>
    %105 = arith.mulf %93, %104 : vector<2x32xf32>
    %106 = arith.addf %102, %105 : vector<2x32xf32>
    %107 = math.tanh %106 : vector<2x32xf32>
    %cst_32 = arith.constant 1.000000e+00 : f32
    %108 = vector.broadcast %cst_32 : f32 to vector<2x32xf32>
    %109 = arith.subf %108, %101 : vector<2x32xf32>
    %110 = arith.mulf %109, %107 : vector<2x32xf32>
    %111 = arith.mulf %101, %42 : vector<2x32xf32>
    %112 = arith.addf %110, %111 : vector<2x32xf32>
    %c0_33 = arith.constant 0 : index
    %c0_34 = arith.constant 0 : index
    %113 = vector.load %arg3[%c0_33, %c0_34] : memref<32x96xf32, #tpu.memory_space<vmem>>, vector<32x96xf32>
    %cst_35 = arith.constant dense<0.000000e+00> : vector<2x96xf32>
    %114 = tpu.matmul %112, %113, %cst_35 {dimension_numbers = #tpu.dot_dimension_numbers<[1], [0], [0], [1], [0, 0, 1, 1], [], []>} : vector<2x32xf32>, vector<32x96xf32>, vector<2x96xf32> -> vector<2x96xf32>
    %115 = arith.addf %114, %8 : vector<2x96xf32>
    %c0_36 = arith.constant 0 : index
    %c0_37 = arith.constant 0 : index
    %116 = vector.load %arg5[%c0_36, %c0_37] : memref<32x96xf32, #tpu.memory_space<vmem>>, vector<32x96xf32>
    %cst_38 = arith.constant dense<0.000000e+00> : vector<2x96xf32>
    %117 = tpu.matmul %74, %116, %cst_38 {dimension_numbers = #tpu.dot_dimension_numbers<[1], [0], [0], [1], [0, 0, 1, 1], [], []>} : vector<2x32xf32>, vector<32x96xf32>, vector<2x96xf32> -> vector<2x96xf32>
    %118 = vector.extract_strided_slice %115 {offsets = [0, 0], sizes = [2, 32], strides = [1, 1]} : vector<2x96xf32> to vector<2x32xf32>
    %119 = vector.extract_strided_slice %117 {offsets = [0, 0], sizes = [2, 32], strides = [1, 1]} : vector<2x96xf32> to vector<2x32xf32>
    %120 = arith.addf %118, %119 : vector<2x32xf32>
    %121 = arith.negf %120 : vector<2x32xf32>
    %122 = math.exp %121 : vector<2x32xf32>
    %cst_39 = arith.constant 1.000000e+00 : f32
    %123 = vector.broadcast %cst_39 : f32 to vector<2x32xf32>
    %124 = arith.addf %123, %122 : vector<2x32xf32>
    %125 = arith.divf %123, %124 : vector<2x32xf32>
    %126 = vector.extract_strided_slice %115 {offsets = [0, 32], sizes = [2, 32], strides = [1, 1]} : vector<2x96xf32> to vector<2x32xf32>
    %127 = vector.extract_strided_slice %117 {offsets = [0, 32], sizes = [2, 32], strides = [1, 1]} : vector<2x96xf32> to vector<2x32xf32>
    %128 = arith.addf %126, %127 : vector<2x32xf32>
    %129 = arith.negf %128 : vector<2x32xf32>
    %130 = math.exp %129 : vector<2x32xf32>
    %cst_40 = arith.constant 1.000000e+00 : f32
    %131 = vector.broadcast %cst_40 : f32 to vector<2x32xf32>
    %132 = arith.addf %131, %130 : vector<2x32xf32>
    %133 = arith.divf %131, %132 : vector<2x32xf32>
    %134 = vector.extract_strided_slice %115 {offsets = [0, 64], sizes = [2, 32], strides = [1, 1]} : vector<2x96xf32> to vector<2x32xf32>
    %135 = vector.extract_strided_slice %117 {offsets = [0, 64], sizes = [2, 32], strides = [1, 1]} : vector<2x96xf32> to vector<2x32xf32>
    %136 = arith.addf %135, %5 : vector<2x32xf32>
    %137 = arith.mulf %125, %136 : vector<2x32xf32>
    %138 = arith.addf %134, %137 : vector<2x32xf32>
    %139 = math.tanh %138 : vector<2x32xf32>
    %cst_41 = arith.constant 1.000000e+00 : f32
    %140 = vector.broadcast %cst_41 : f32 to vector<2x32xf32>
    %141 = arith.subf %140, %133 : vector<2x32xf32>
    %142 = arith.mulf %141, %139 : vector<2x32xf32>
    %143 = arith.mulf %133, %74 : vector<2x32xf32>
    %144 = arith.addf %142, %143 : vector<2x32xf32>
    %c6_i32_42 = arith.constant 6 : i32
    %145 = arith.cmpi eq, %c1_i32, %c6_i32_42 : i32
    %146 = arith.extui %145 : i1 to i32
    %c0_i32_43 = arith.constant 0 : i32
    %147 = arith.cmpi ne, %146, %c0_i32_43 : i32
    scf.if %147 {
      %578 = vector.extract_strided_slice %144 {offsets = [1, 0], sizes = [1, 32], strides = [1, 1]} : vector<2x32xf32> to vector<1x32xf32>
      %c0_183 = arith.constant 0 : index
      %c0_184 = arith.constant 0 : index
      %579 = vector.load %arg10[%c0_183, %c0_184] : memref<2x32xf32, #tpu.memory_space<vmem>>, vector<1x32xf32>
      tpu.vector_store %arg10[%c0_183, %c0_184], %578 {strides = array<i32>} : memref<2x32xf32, #tpu.memory_space<vmem>>, vector<1x32xf32>,
    } else {
    }
    %c7_i32_44 = arith.constant 7 : i32
    %148 = arith.cmpi eq, %c1_i32, %c7_i32_44 : i32
    %149 = arith.extui %148 : i1 to i32
    %c0_i32_45 = arith.constant 0 : i32
    %150 = arith.cmpi ne, %149, %c0_i32_45 : i32
    scf.if %150 {
      %578 = vector.extract_strided_slice %144 {offsets = [1, 0], sizes = [1, 32], strides = [1, 1]} : vector<2x32xf32> to vector<1x32xf32>
      %c1 = arith.constant 1 : index
      %c0_183 = arith.constant 0 : index
      %579 = vector.load %arg10[%c1, %c0_183] : memref<2x32xf32, #tpu.memory_space<vmem>>, vector<1x32xf32>
      tpu.vector_store %arg10[%c1, %c0_183], %578 {strides = array<i32>} : memref<2x32xf32, #tpu.memory_space<vmem>>, vector<1x32xf32>,
    } else {
    }
    %c2_i32 = arith.constant 2 : i32
    %151 = arith.index_cast %c2_i32 : i32 to index
    %c0_46 = arith.constant 0 : index
    %c0_47 = arith.constant 0 : index
    %152 = vector.load %arg0[%151, %c0_46, %c0_47] : memref<8x2x96xf32, #tpu.memory_space<vmem>>, vector<1x2x96xf32>
    %153 = vector.shape_cast %152 : vector<1x2x96xf32> to vector<2x96xf32>
    %c0_48 = arith.constant 0 : index
    %c0_49 = arith.constant 0 : index
    %154 = vector.load %arg1[%c0_48, %c0_49] : memref<32x96xf32, #tpu.memory_space<vmem>>, vector<32x96xf32>
    %cst_50 = arith.constant dense<0.000000e+00> : vector<2x96xf32>
    %155 = tpu.matmul %112, %154, %cst_50 {dimension_numbers = #tpu.dot_dimension_numbers<[1], [0], [0], [1], [0, 0, 1, 1], [], []>} : vector<2x32xf32>, vector<32x96xf32>, vector<2x96xf32> -> vector<2x96xf32>
    %156 = vector.extract_strided_slice %153 {offsets = [0, 0], sizes = [2, 32], strides = [1, 1]} : vector<2x96xf32> to vector<2x32xf32>
    %157 = vector.extract_strided_slice %155 {offsets = [0, 0], sizes = [2, 32], strides = [1, 1]} : vector<2x96xf32> to vector<2x32xf32>
    %158 = arith.addf %156, %157 : vector<2x32xf32>
    %159 = arith.negf %158 : vector<2x32xf32>
    %160 = math.exp %159 : vector<2x32xf32>
    %cst_51 = arith.constant 1.000000e+00 : f32
    %161 = vector.broadcast %cst_51 : f32 to vector<2x32xf32>
    %162 = arith.addf %161, %160 : vector<2x32xf32>
    %163 = arith.divf %161, %162 : vector<2x32xf32>
    %164 = vector.extract_strided_slice %153 {offsets = [0, 32], sizes = [2, 32], strides = [1, 1]} : vector<2x96xf32> to vector<2x32xf32>
    %165 = vector.extract_strided_slice %155 {offsets = [0, 32], sizes = [2, 32], strides = [1, 1]} : vector<2x96xf32> to vector<2x32xf32>
    %166 = arith.addf %164, %165 : vector<2x32xf32>
    %167 = arith.negf %166 : vector<2x32xf32>
    %168 = math.exp %167 : vector<2x32xf32>
    %cst_52 = arith.constant 1.000000e+00 : f32
    %169 = vector.broadcast %cst_52 : f32 to vector<2x32xf32>
    %170 = arith.addf %169, %168 : vector<2x32xf32>
    %171 = arith.divf %169, %170 : vector<2x32xf32>
    %172 = vector.extract_strided_slice %153 {offsets = [0, 64], sizes = [2, 32], strides = [1, 1]} : vector<2x96xf32> to vector<2x32xf32>
    %173 = vector.extract_strided_slice %155 {offsets = [0, 64], sizes = [2, 32], strides = [1, 1]} : vector<2x96xf32> to vector<2x32xf32>
    %174 = arith.addf %173, %2 : vector<2x32xf32>
    %175 = arith.mulf %163, %174 : vector<2x32xf32>
    %176 = arith.addf %172, %175 : vector<2x32xf32>
    %177 = math.tanh %176 : vector<2x32xf32>
    %cst_53 = arith.constant 1.000000e+00 : f32
    %178 = vector.broadcast %cst_53 : f32 to vector<2x32xf32>
    %179 = arith.subf %178, %171 : vector<2x32xf32>
    %180 = arith.mulf %179, %177 : vector<2x32xf32>
    %181 = arith.mulf %171, %112 : vector<2x32xf32>
    %182 = arith.addf %180, %181 : vector<2x32xf32>
    %c0_54 = arith.constant 0 : index
    %c0_55 = arith.constant 0 : index
    %183 = vector.load %arg3[%c0_54, %c0_55] : memref<32x96xf32, #tpu.memory_space<vmem>>, vector<32x96xf32>
    %cst_56 = arith.constant dense<0.000000e+00> : vector<2x96xf32>
    %184 = tpu.matmul %182, %183, %cst_56 {dimension_numbers = #tpu.dot_dimension_numbers<[1], [0], [0], [1], [0, 0, 1, 1], [], []>} : vector<2x32xf32>, vector<32x96xf32>, vector<2x96xf32> -> vector<2x96xf32>
    %185 = arith.addf %184, %8 : vector<2x96xf32>
    %c0_57 = arith.constant 0 : index
    %c0_58 = arith.constant 0 : index
    %186 = vector.load %arg5[%c0_57, %c0_58] : memref<32x96xf32, #tpu.memory_space<vmem>>, vector<32x96xf32>
    %cst_59 = arith.constant dense<0.000000e+00> : vector<2x96xf32>
    %187 = tpu.matmul %144, %186, %cst_59 {dimension_numbers = #tpu.dot_dimension_numbers<[1], [0], [0], [1], [0, 0, 1, 1], [], []>} : vector<2x32xf32>, vector<32x96xf32>, vector<2x96xf32> -> vector<2x96xf32>
    %188 = vector.extract_strided_slice %185 {offsets = [0, 0], sizes = [2, 32], strides = [1, 1]} : vector<2x96xf32> to vector<2x32xf32>
    %189 = vector.extract_strided_slice %187 {offsets = [0, 0], sizes = [2, 32], strides = [1, 1]} : vector<2x96xf32> to vector<2x32xf32>
    %190 = arith.addf %188, %189 : vector<2x32xf32>
    %191 = arith.negf %190 : vector<2x32xf32>
    %192 = math.exp %191 : vector<2x32xf32>
    %cst_60 = arith.constant 1.000000e+00 : f32
    %193 = vector.broadcast %cst_60 : f32 to vector<2x32xf32>
    %194 = arith.addf %193, %192 : vector<2x32xf32>
    %195 = arith.divf %193, %194 : vector<2x32xf32>
    %196 = vector.extract_strided_slice %185 {offsets = [0, 32], sizes = [2, 32], strides = [1, 1]} : vector<2x96xf32> to vector<2x32xf32>
    %197 = vector.extract_strided_slice %187 {offsets = [0, 32], sizes = [2, 32], strides = [1, 1]} : vector<2x96xf32> to vector<2x32xf32>
    %198 = arith.addf %196, %197 : vector<2x32xf32>
    %199 = arith.negf %198 : vector<2x32xf32>
    %200 = math.exp %199 : vector<2x32xf32>
    %cst_61 = arith.constant 1.000000e+00 : f32
    %201 = vector.broadcast %cst_61 : f32 to vector<2x32xf32>
    %202 = arith.addf %201, %200 : vector<2x32xf32>
    %203 = arith.divf %201, %202 : vector<2x32xf32>
    %204 = vector.extract_strided_slice %185 {offsets = [0, 64], sizes = [2, 32], strides = [1, 1]} : vector<2x96xf32> to vector<2x32xf32>
    %205 = vector.extract_strided_slice %187 {offsets = [0, 64], sizes = [2, 32], strides = [1, 1]} : vector<2x96xf32> to vector<2x32xf32>
    %206 = arith.addf %205, %5 : vector<2x32xf32>
    %207 = arith.mulf %195, %206 : vector<2x32xf32>
    %208 = arith.addf %204, %207 : vector<2x32xf32>
    %209 = math.tanh %208 : vector<2x32xf32>
    %cst_62 = arith.constant 1.000000e+00 : f32
    %210 = vector.broadcast %cst_62 : f32 to vector<2x32xf32>
    %211 = arith.subf %210, %203 : vector<2x32xf32>
    %212 = arith.mulf %211, %209 : vector<2x32xf32>
    %213 = arith.mulf %203, %144 : vector<2x32xf32>
    %214 = arith.addf %212, %213 : vector<2x32xf32>
    %c6_i32_63 = arith.constant 6 : i32
    %215 = arith.cmpi eq, %c2_i32, %c6_i32_63 : i32
    %216 = arith.extui %215 : i1 to i32
    %c0_i32_64 = arith.constant 0 : i32
    %217 = arith.cmpi ne, %216, %c0_i32_64 : i32
    scf.if %217 {
      %578 = vector.extract_strided_slice %214 {offsets = [1, 0], sizes = [1, 32], strides = [1, 1]} : vector<2x32xf32> to vector<1x32xf32>
      %c0_183 = arith.constant 0 : index
      %c0_184 = arith.constant 0 : index
      %579 = vector.load %arg10[%c0_183, %c0_184] : memref<2x32xf32, #tpu.memory_space<vmem>>, vector<1x32xf32>
      tpu.vector_store %arg10[%c0_183, %c0_184], %578 {strides = array<i32>} : memref<2x32xf32, #tpu.memory_space<vmem>>, vector<1x32xf32>,
    } else {
    }
    %c7_i32_65 = arith.constant 7 : i32
    %218 = arith.cmpi eq, %c2_i32, %c7_i32_65 : i32
    %219 = arith.extui %218 : i1 to i32
    %c0_i32_66 = arith.constant 0 : i32
    %220 = arith.cmpi ne, %219, %c0_i32_66 : i32
    scf.if %220 {
      %578 = vector.extract_strided_slice %214 {offsets = [1, 0], sizes = [1, 32], strides = [1, 1]} : vector<2x32xf32> to vector<1x32xf32>
      %c1 = arith.constant 1 : index
      %c0_183 = arith.constant 0 : index
      %579 = vector.load %arg10[%c1, %c0_183] : memref<2x32xf32, #tpu.memory_space<vmem>>, vector<1x32xf32>
      tpu.vector_store %arg10[%c1, %c0_183], %578 {strides = array<i32>} : memref<2x32xf32, #tpu.memory_space<vmem>>, vector<1x32xf32>,
    } else {
    }
    %c3_i32 = arith.constant 3 : i32
    %221 = arith.index_cast %c3_i32 : i32 to index
    %c0_67 = arith.constant 0 : index
    %c0_68 = arith.constant 0 : index
    %222 = vector.load %arg0[%221, %c0_67, %c0_68] : memref<8x2x96xf32, #tpu.memory_space<vmem>>, vector<1x2x96xf32>
    %223 = vector.shape_cast %222 : vector<1x2x96xf32> to vector<2x96xf32>
    %c0_69 = arith.constant 0 : index
    %c0_70 = arith.constant 0 : index
    %224 = vector.load %arg1[%c0_69, %c0_70] : memref<32x96xf32, #tpu.memory_space<vmem>>, vector<32x96xf32>
    %cst_71 = arith.constant dense<0.000000e+00> : vector<2x96xf32>
    %225 = tpu.matmul %182, %224, %cst_71 {dimension_numbers = #tpu.dot_dimension_numbers<[1], [0], [0], [1], [0, 0, 1, 1], [], []>} : vector<2x32xf32>, vector<32x96xf32>, vector<2x96xf32> -> vector<2x96xf32>
    %226 = vector.extract_strided_slice %223 {offsets = [0, 0], sizes = [2, 32], strides = [1, 1]} : vector<2x96xf32> to vector<2x32xf32>
    %227 = vector.extract_strided_slice %225 {offsets = [0, 0], sizes = [2, 32], strides = [1, 1]} : vector<2x96xf32> to vector<2x32xf32>
    %228 = arith.addf %226, %227 : vector<2x32xf32>
    %229 = arith.negf %228 : vector<2x32xf32>
    %230 = math.exp %229 : vector<2x32xf32>
    %cst_72 = arith.constant 1.000000e+00 : f32
    %231 = vector.broadcast %cst_72 : f32 to vector<2x32xf32>
    %232 = arith.addf %231, %230 : vector<2x32xf32>
    %233 = arith.divf %231, %232 : vector<2x32xf32>
    %234 = vector.extract_strided_slice %223 {offsets = [0, 32], sizes = [2, 32], strides = [1, 1]} : vector<2x96xf32> to vector<2x32xf32>
    %235 = vector.extract_strided_slice %225 {offsets = [0, 32], sizes = [2, 32], strides = [1, 1]} : vector<2x96xf32> to vector<2x32xf32>
    %236 = arith.addf %234, %235 : vector<2x32xf32>
    %237 = arith.negf %236 : vector<2x32xf32>
    %238 = math.exp %237 : vector<2x32xf32>
    %cst_73 = arith.constant 1.000000e+00 : f32
    %239 = vector.broadcast %cst_73 : f32 to vector<2x32xf32>
    %240 = arith.addf %239, %238 : vector<2x32xf32>
    %241 = arith.divf %239, %240 : vector<2x32xf32>
    %242 = vector.extract_strided_slice %223 {offsets = [0, 64], sizes = [2, 32], strides = [1, 1]} : vector<2x96xf32> to vector<2x32xf32>
    %243 = vector.extract_strided_slice %225 {offsets = [0, 64], sizes = [2, 32], strides = [1, 1]} : vector<2x96xf32> to vector<2x32xf32>
    %244 = arith.addf %243, %2 : vector<2x32xf32>
    %245 = arith.mulf %233, %244 : vector<2x32xf32>
    %246 = arith.addf %242, %245 : vector<2x32xf32>
    %247 = math.tanh %246 : vector<2x32xf32>
    %cst_74 = arith.constant 1.000000e+00 : f32
    %248 = vector.broadcast %cst_74 : f32 to vector<2x32xf32>
    %249 = arith.subf %248, %241 : vector<2x32xf32>
    %250 = arith.mulf %249, %247 : vector<2x32xf32>
    %251 = arith.mulf %241, %182 : vector<2x32xf32>
    %252 = arith.addf %250, %251 : vector<2x32xf32>
    %c0_75 = arith.constant 0 : index
    %c0_76 = arith.constant 0 : index
    %253 = vector.load %arg3[%c0_75, %c0_76] : memref<32x96xf32, #tpu.memory_space<vmem>>, vector<32x96xf32>
    %cst_77 = arith.constant dense<0.000000e+00> : vector<2x96xf32>
    %254 = tpu.matmul %252, %253, %cst_77 {dimension_numbers = #tpu.dot_dimension_numbers<[1], [0], [0], [1], [0, 0, 1, 1], [], []>} : vector<2x32xf32>, vector<32x96xf32>, vector<2x96xf32> -> vector<2x96xf32>
    %255 = arith.addf %254, %8 : vector<2x96xf32>
    %c0_78 = arith.constant 0 : index
    %c0_79 = arith.constant 0 : index
    %256 = vector.load %arg5[%c0_78, %c0_79] : memref<32x96xf32, #tpu.memory_space<vmem>>, vector<32x96xf32>
    %cst_80 = arith.constant dense<0.000000e+00> : vector<2x96xf32>
    %257 = tpu.matmul %214, %256, %cst_80 {dimension_numbers = #tpu.dot_dimension_numbers<[1], [0], [0], [1], [0, 0, 1, 1], [], []>} : vector<2x32xf32>, vector<32x96xf32>, vector<2x96xf32> -> vector<2x96xf32>
    %258 = vector.extract_strided_slice %255 {offsets = [0, 0], sizes = [2, 32], strides = [1, 1]} : vector<2x96xf32> to vector<2x32xf32>
    %259 = vector.extract_strided_slice %257 {offsets = [0, 0], sizes = [2, 32], strides = [1, 1]} : vector<2x96xf32> to vector<2x32xf32>
    %260 = arith.addf %258, %259 : vector<2x32xf32>
    %261 = arith.negf %260 : vector<2x32xf32>
    %262 = math.exp %261 : vector<2x32xf32>
    %cst_81 = arith.constant 1.000000e+00 : f32
    %263 = vector.broadcast %cst_81 : f32 to vector<2x32xf32>
    %264 = arith.addf %263, %262 : vector<2x32xf32>
    %265 = arith.divf %263, %264 : vector<2x32xf32>
    %266 = vector.extract_strided_slice %255 {offsets = [0, 32], sizes = [2, 32], strides = [1, 1]} : vector<2x96xf32> to vector<2x32xf32>
    %267 = vector.extract_strided_slice %257 {offsets = [0, 32], sizes = [2, 32], strides = [1, 1]} : vector<2x96xf32> to vector<2x32xf32>
    %268 = arith.addf %266, %267 : vector<2x32xf32>
    %269 = arith.negf %268 : vector<2x32xf32>
    %270 = math.exp %269 : vector<2x32xf32>
    %cst_82 = arith.constant 1.000000e+00 : f32
    %271 = vector.broadcast %cst_82 : f32 to vector<2x32xf32>
    %272 = arith.addf %271, %270 : vector<2x32xf32>
    %273 = arith.divf %271, %272 : vector<2x32xf32>
    %274 = vector.extract_strided_slice %255 {offsets = [0, 64], sizes = [2, 32], strides = [1, 1]} : vector<2x96xf32> to vector<2x32xf32>
    %275 = vector.extract_strided_slice %257 {offsets = [0, 64], sizes = [2, 32], strides = [1, 1]} : vector<2x96xf32> to vector<2x32xf32>
    %276 = arith.addf %275, %5 : vector<2x32xf32>
    %277 = arith.mulf %265, %276 : vector<2x32xf32>
    %278 = arith.addf %274, %277 : vector<2x32xf32>
    %279 = math.tanh %278 : vector<2x32xf32>
    %cst_83 = arith.constant 1.000000e+00 : f32
    %280 = vector.broadcast %cst_83 : f32 to vector<2x32xf32>
    %281 = arith.subf %280, %273 : vector<2x32xf32>
    %282 = arith.mulf %281, %279 : vector<2x32xf32>
    %283 = arith.mulf %273, %214 : vector<2x32xf32>
    %284 = arith.addf %282, %283 : vector<2x32xf32>
    %c6_i32_84 = arith.constant 6 : i32
    %285 = arith.cmpi eq, %c3_i32, %c6_i32_84 : i32
    %286 = arith.extui %285 : i1 to i32
    %c0_i32_85 = arith.constant 0 : i32
    %287 = arith.cmpi ne, %286, %c0_i32_85 : i32
    scf.if %287 {
      %578 = vector.extract_strided_slice %284 {offsets = [1, 0], sizes = [1, 32], strides = [1, 1]} : vector<2x32xf32> to vector<1x32xf32>
      %c0_183 = arith.constant 0 : index
      %c0_184 = arith.constant 0 : index
      %579 = vector.load %arg10[%c0_183, %c0_184] : memref<2x32xf32, #tpu.memory_space<vmem>>, vector<1x32xf32>
      tpu.vector_store %arg10[%c0_183, %c0_184], %578 {strides = array<i32>} : memref<2x32xf32, #tpu.memory_space<vmem>>, vector<1x32xf32>,
    } else {
    }
    %c7_i32_86 = arith.constant 7 : i32
    %288 = arith.cmpi eq, %c3_i32, %c7_i32_86 : i32
    %289 = arith.extui %288 : i1 to i32
    %c0_i32_87 = arith.constant 0 : i32
    %290 = arith.cmpi ne, %289, %c0_i32_87 : i32
    scf.if %290 {
      %578 = vector.extract_strided_slice %284 {offsets = [1, 0], sizes = [1, 32], strides = [1, 1]} : vector<2x32xf32> to vector<1x32xf32>
      %c1 = arith.constant 1 : index
      %c0_183 = arith.constant 0 : index
      %579 = vector.load %arg10[%c1, %c0_183] : memref<2x32xf32, #tpu.memory_space<vmem>>, vector<1x32xf32>
      tpu.vector_store %arg10[%c1, %c0_183], %578 {strides = array<i32>} : memref<2x32xf32, #tpu.memory_space<vmem>>, vector<1x32xf32>,
    } else {
    }
    %c4_i32 = arith.constant 4 : i32
    %291 = arith.index_cast %c4_i32 : i32 to index
    %c0_88 = arith.constant 0 : index
    %c0_89 = arith.constant 0 : index
    %292 = vector.load %arg0[%291, %c0_88, %c0_89] : memref<8x2x96xf32, #tpu.memory_space<vmem>>, vector<1x2x96xf32>
    %293 = vector.shape_cast %292 : vector<1x2x96xf32> to vector<2x96xf32>
    %c0_90 = arith.constant 0 : index
    %c0_91 = arith.constant 0 : index
    %294 = vector.load %arg1[%c0_90, %c0_91] : memref<32x96xf32, #tpu.memory_space<vmem>>, vector<32x96xf32>
    %cst_92 = arith.constant dense<0.000000e+00> : vector<2x96xf32>
    %295 = tpu.matmul %252, %294, %cst_92 {dimension_numbers = #tpu.dot_dimension_numbers<[1], [0], [0], [1], [0, 0, 1, 1], [], []>} : vector<2x32xf32>, vector<32x96xf32>, vector<2x96xf32> -> vector<2x96xf32>
    %296 = vector.extract_strided_slice %293 {offsets = [0, 0], sizes = [2, 32], strides = [1, 1]} : vector<2x96xf32> to vector<2x32xf32>
    %297 = vector.extract_strided_slice %295 {offsets = [0, 0], sizes = [2, 32], strides = [1, 1]} : vector<2x96xf32> to vector<2x32xf32>
    %298 = arith.addf %296, %297 : vector<2x32xf32>
    %299 = arith.negf %298 : vector<2x32xf32>
    %300 = math.exp %299 : vector<2x32xf32>
    %cst_93 = arith.constant 1.000000e+00 : f32
    %301 = vector.broadcast %cst_93 : f32 to vector<2x32xf32>
    %302 = arith.addf %301, %300 : vector<2x32xf32>
    %303 = arith.divf %301, %302 : vector<2x32xf32>
    %304 = vector.extract_strided_slice %293 {offsets = [0, 32], sizes = [2, 32], strides = [1, 1]} : vector<2x96xf32> to vector<2x32xf32>
    %305 = vector.extract_strided_slice %295 {offsets = [0, 32], sizes = [2, 32], strides = [1, 1]} : vector<2x96xf32> to vector<2x32xf32>
    %306 = arith.addf %304, %305 : vector<2x32xf32>
    %307 = arith.negf %306 : vector<2x32xf32>
    %308 = math.exp %307 : vector<2x32xf32>
    %cst_94 = arith.constant 1.000000e+00 : f32
    %309 = vector.broadcast %cst_94 : f32 to vector<2x32xf32>
    %310 = arith.addf %309, %308 : vector<2x32xf32>
    %311 = arith.divf %309, %310 : vector<2x32xf32>
    %312 = vector.extract_strided_slice %293 {offsets = [0, 64], sizes = [2, 32], strides = [1, 1]} : vector<2x96xf32> to vector<2x32xf32>
    %313 = vector.extract_strided_slice %295 {offsets = [0, 64], sizes = [2, 32], strides = [1, 1]} : vector<2x96xf32> to vector<2x32xf32>
    %314 = arith.addf %313, %2 : vector<2x32xf32>
    %315 = arith.mulf %303, %314 : vector<2x32xf32>
    %316 = arith.addf %312, %315 : vector<2x32xf32>
    %317 = math.tanh %316 : vector<2x32xf32>
    %cst_95 = arith.constant 1.000000e+00 : f32
    %318 = vector.broadcast %cst_95 : f32 to vector<2x32xf32>
    %319 = arith.subf %318, %311 : vector<2x32xf32>
    %320 = arith.mulf %319, %317 : vector<2x32xf32>
    %321 = arith.mulf %311, %252 : vector<2x32xf32>
    %322 = arith.addf %320, %321 : vector<2x32xf32>
    %c0_96 = arith.constant 0 : index
    %c0_97 = arith.constant 0 : index
    %323 = vector.load %arg3[%c0_96, %c0_97] : memref<32x96xf32, #tpu.memory_space<vmem>>, vector<32x96xf32>
    %cst_98 = arith.constant dense<0.000000e+00> : vector<2x96xf32>
    %324 = tpu.matmul %322, %323, %cst_98 {dimension_numbers = #tpu.dot_dimension_numbers<[1], [0], [0], [1], [0, 0, 1, 1], [], []>} : vector<2x32xf32>, vector<32x96xf32>, vector<2x96xf32> -> vector<2x96xf32>
    %325 = arith.addf %324, %8 : vector<2x96xf32>
    %c0_99 = arith.constant 0 : index
    %c0_100 = arith.constant 0 : index
    %326 = vector.load %arg5[%c0_99, %c0_100] : memref<32x96xf32, #tpu.memory_space<vmem>>, vector<32x96xf32>
    %cst_101 = arith.constant dense<0.000000e+00> : vector<2x96xf32>
    %327 = tpu.matmul %284, %326, %cst_101 {dimension_numbers = #tpu.dot_dimension_numbers<[1], [0], [0], [1], [0, 0, 1, 1], [], []>} : vector<2x32xf32>, vector<32x96xf32>, vector<2x96xf32> -> vector<2x96xf32>
    %328 = vector.extract_strided_slice %325 {offsets = [0, 0], sizes = [2, 32], strides = [1, 1]} : vector<2x96xf32> to vector<2x32xf32>
    %329 = vector.extract_strided_slice %327 {offsets = [0, 0], sizes = [2, 32], strides = [1, 1]} : vector<2x96xf32> to vector<2x32xf32>
    %330 = arith.addf %328, %329 : vector<2x32xf32>
    %331 = arith.negf %330 : vector<2x32xf32>
    %332 = math.exp %331 : vector<2x32xf32>
    %cst_102 = arith.constant 1.000000e+00 : f32
    %333 = vector.broadcast %cst_102 : f32 to vector<2x32xf32>
    %334 = arith.addf %333, %332 : vector<2x32xf32>
    %335 = arith.divf %333, %334 : vector<2x32xf32>
    %336 = vector.extract_strided_slice %325 {offsets = [0, 32], sizes = [2, 32], strides = [1, 1]} : vector<2x96xf32> to vector<2x32xf32>
    %337 = vector.extract_strided_slice %327 {offsets = [0, 32], sizes = [2, 32], strides = [1, 1]} : vector<2x96xf32> to vector<2x32xf32>
    %338 = arith.addf %336, %337 : vector<2x32xf32>
    %339 = arith.negf %338 : vector<2x32xf32>
    %340 = math.exp %339 : vector<2x32xf32>
    %cst_103 = arith.constant 1.000000e+00 : f32
    %341 = vector.broadcast %cst_103 : f32 to vector<2x32xf32>
    %342 = arith.addf %341, %340 : vector<2x32xf32>
    %343 = arith.divf %341, %342 : vector<2x32xf32>
    %344 = vector.extract_strided_slice %325 {offsets = [0, 64], sizes = [2, 32], strides = [1, 1]} : vector<2x96xf32> to vector<2x32xf32>
    %345 = vector.extract_strided_slice %327 {offsets = [0, 64], sizes = [2, 32], strides = [1, 1]} : vector<2x96xf32> to vector<2x32xf32>
    %346 = arith.addf %345, %5 : vector<2x32xf32>
    %347 = arith.mulf %335, %346 : vector<2x32xf32>
    %348 = arith.addf %344, %347 : vector<2x32xf32>
    %349 = math.tanh %348 : vector<2x32xf32>
    %cst_104 = arith.constant 1.000000e+00 : f32
    %350 = vector.broadcast %cst_104 : f32 to vector<2x32xf32>
    %351 = arith.subf %350, %343 : vector<2x32xf32>
    %352 = arith.mulf %351, %349 : vector<2x32xf32>
    %353 = arith.mulf %343, %284 : vector<2x32xf32>
    %354 = arith.addf %352, %353 : vector<2x32xf32>
    %c6_i32_105 = arith.constant 6 : i32
    %355 = arith.cmpi eq, %c4_i32, %c6_i32_105 : i32
    %356 = arith.extui %355 : i1 to i32
    %c0_i32_106 = arith.constant 0 : i32
    %357 = arith.cmpi ne, %356, %c0_i32_106 : i32
    scf.if %357 {
      %578 = vector.extract_strided_slice %354 {offsets = [1, 0], sizes = [1, 32], strides = [1, 1]} : vector<2x32xf32> to vector<1x32xf32>
      %c0_183 = arith.constant 0 : index
      %c0_184 = arith.constant 0 : index
      %579 = vector.load %arg10[%c0_183, %c0_184] : memref<2x32xf32, #tpu.memory_space<vmem>>, vector<1x32xf32>
      tpu.vector_store %arg10[%c0_183, %c0_184], %578 {strides = array<i32>} : memref<2x32xf32, #tpu.memory_space<vmem>>, vector<1x32xf32>,
    } else {
    }
    %c7_i32_107 = arith.constant 7 : i32
    %358 = arith.cmpi eq, %c4_i32, %c7_i32_107 : i32
    %359 = arith.extui %358 : i1 to i32
    %c0_i32_108 = arith.constant 0 : i32
    %360 = arith.cmpi ne, %359, %c0_i32_108 : i32
    scf.if %360 {
      %578 = vector.extract_strided_slice %354 {offsets = [1, 0], sizes = [1, 32], strides = [1, 1]} : vector<2x32xf32> to vector<1x32xf32>
      %c1 = arith.constant 1 : index
      %c0_183 = arith.constant 0 : index
      %579 = vector.load %arg10[%c1, %c0_183] : memref<2x32xf32, #tpu.memory_space<vmem>>, vector<1x32xf32>
      tpu.vector_store %arg10[%c1, %c0_183], %578 {strides = array<i32>} : memref<2x32xf32, #tpu.memory_space<vmem>>, vector<1x32xf32>,
    } else {
    }
    %c5_i32 = arith.constant 5 : i32
    %361 = arith.index_cast %c5_i32 : i32 to index
    %c0_109 = arith.constant 0 : index
    %c0_110 = arith.constant 0 : index
    %362 = vector.load %arg0[%361, %c0_109, %c0_110] : memref<8x2x96xf32, #tpu.memory_space<vmem>>, vector<1x2x96xf32>
    %363 = vector.shape_cast %362 : vector<1x2x96xf32> to vector<2x96xf32>
    %c0_111 = arith.constant 0 : index
    %c0_112 = arith.constant 0 : index
    %364 = vector.load %arg1[%c0_111, %c0_112] : memref<32x96xf32, #tpu.memory_space<vmem>>, vector<32x96xf32>
    %cst_113 = arith.constant dense<0.000000e+00> : vector<2x96xf32>
    %365 = tpu.matmul %322, %364, %cst_113 {dimension_numbers = #tpu.dot_dimension_numbers<[1], [0], [0], [1], [0, 0, 1, 1], [], []>} : vector<2x32xf32>, vector<32x96xf32>, vector<2x96xf32> -> vector<2x96xf32>
    %366 = vector.extract_strided_slice %363 {offsets = [0, 0], sizes = [2, 32], strides = [1, 1]} : vector<2x96xf32> to vector<2x32xf32>
    %367 = vector.extract_strided_slice %365 {offsets = [0, 0], sizes = [2, 32], strides = [1, 1]} : vector<2x96xf32> to vector<2x32xf32>
    %368 = arith.addf %366, %367 : vector<2x32xf32>
    %369 = arith.negf %368 : vector<2x32xf32>
    %370 = math.exp %369 : vector<2x32xf32>
    %cst_114 = arith.constant 1.000000e+00 : f32
    %371 = vector.broadcast %cst_114 : f32 to vector<2x32xf32>
    %372 = arith.addf %371, %370 : vector<2x32xf32>
    %373 = arith.divf %371, %372 : vector<2x32xf32>
    %374 = vector.extract_strided_slice %363 {offsets = [0, 32], sizes = [2, 32], strides = [1, 1]} : vector<2x96xf32> to vector<2x32xf32>
    %375 = vector.extract_strided_slice %365 {offsets = [0, 32], sizes = [2, 32], strides = [1, 1]} : vector<2x96xf32> to vector<2x32xf32>
    %376 = arith.addf %374, %375 : vector<2x32xf32>
    %377 = arith.negf %376 : vector<2x32xf32>
    %378 = math.exp %377 : vector<2x32xf32>
    %cst_115 = arith.constant 1.000000e+00 : f32
    %379 = vector.broadcast %cst_115 : f32 to vector<2x32xf32>
    %380 = arith.addf %379, %378 : vector<2x32xf32>
    %381 = arith.divf %379, %380 : vector<2x32xf32>
    %382 = vector.extract_strided_slice %363 {offsets = [0, 64], sizes = [2, 32], strides = [1, 1]} : vector<2x96xf32> to vector<2x32xf32>
    %383 = vector.extract_strided_slice %365 {offsets = [0, 64], sizes = [2, 32], strides = [1, 1]} : vector<2x96xf32> to vector<2x32xf32>
    %384 = arith.addf %383, %2 : vector<2x32xf32>
    %385 = arith.mulf %373, %384 : vector<2x32xf32>
    %386 = arith.addf %382, %385 : vector<2x32xf32>
    %387 = math.tanh %386 : vector<2x32xf32>
    %cst_116 = arith.constant 1.000000e+00 : f32
    %388 = vector.broadcast %cst_116 : f32 to vector<2x32xf32>
    %389 = arith.subf %388, %381 : vector<2x32xf32>
    %390 = arith.mulf %389, %387 : vector<2x32xf32>
    %391 = arith.mulf %381, %322 : vector<2x32xf32>
    %392 = arith.addf %390, %391 : vector<2x32xf32>
    %c0_117 = arith.constant 0 : index
    %c0_118 = arith.constant 0 : index
    %393 = vector.load %arg3[%c0_117, %c0_118] : memref<32x96xf32, #tpu.memory_space<vmem>>, vector<32x96xf32>
    %cst_119 = arith.constant dense<0.000000e+00> : vector<2x96xf32>
    %394 = tpu.matmul %392, %393, %cst_119 {dimension_numbers = #tpu.dot_dimension_numbers<[1], [0], [0], [1], [0, 0, 1, 1], [], []>} : vector<2x32xf32>, vector<32x96xf32>, vector<2x96xf32> -> vector<2x96xf32>
    %395 = arith.addf %394, %8 : vector<2x96xf32>
    %c0_120 = arith.constant 0 : index
    %c0_121 = arith.constant 0 : index
    %396 = vector.load %arg5[%c0_120, %c0_121] : memref<32x96xf32, #tpu.memory_space<vmem>>, vector<32x96xf32>
    %cst_122 = arith.constant dense<0.000000e+00> : vector<2x96xf32>
    %397 = tpu.matmul %354, %396, %cst_122 {dimension_numbers = #tpu.dot_dimension_numbers<[1], [0], [0], [1], [0, 0, 1, 1], [], []>} : vector<2x32xf32>, vector<32x96xf32>, vector<2x96xf32> -> vector<2x96xf32>
    %398 = vector.extract_strided_slice %395 {offsets = [0, 0], sizes = [2, 32], strides = [1, 1]} : vector<2x96xf32> to vector<2x32xf32>
    %399 = vector.extract_strided_slice %397 {offsets = [0, 0], sizes = [2, 32], strides = [1, 1]} : vector<2x96xf32> to vector<2x32xf32>
    %400 = arith.addf %398, %399 : vector<2x32xf32>
    %401 = arith.negf %400 : vector<2x32xf32>
    %402 = math.exp %401 : vector<2x32xf32>
    %cst_123 = arith.constant 1.000000e+00 : f32
    %403 = vector.broadcast %cst_123 : f32 to vector<2x32xf32>
    %404 = arith.addf %403, %402 : vector<2x32xf32>
    %405 = arith.divf %403, %404 : vector<2x32xf32>
    %406 = vector.extract_strided_slice %395 {offsets = [0, 32], sizes = [2, 32], strides = [1, 1]} : vector<2x96xf32> to vector<2x32xf32>
    %407 = vector.extract_strided_slice %397 {offsets = [0, 32], sizes = [2, 32], strides = [1, 1]} : vector<2x96xf32> to vector<2x32xf32>
    %408 = arith.addf %406, %407 : vector<2x32xf32>
    %409 = arith.negf %408 : vector<2x32xf32>
    %410 = math.exp %409 : vector<2x32xf32>
    %cst_124 = arith.constant 1.000000e+00 : f32
    %411 = vector.broadcast %cst_124 : f32 to vector<2x32xf32>
    %412 = arith.addf %411, %410 : vector<2x32xf32>
    %413 = arith.divf %411, %412 : vector<2x32xf32>
    %414 = vector.extract_strided_slice %395 {offsets = [0, 64], sizes = [2, 32], strides = [1, 1]} : vector<2x96xf32> to vector<2x32xf32>
    %415 = vector.extract_strided_slice %397 {offsets = [0, 64], sizes = [2, 32], strides = [1, 1]} : vector<2x96xf32> to vector<2x32xf32>
    %416 = arith.addf %415, %5 : vector<2x32xf32>
    %417 = arith.mulf %405, %416 : vector<2x32xf32>
    %418 = arith.addf %414, %417 : vector<2x32xf32>
    %419 = math.tanh %418 : vector<2x32xf32>
    %cst_125 = arith.constant 1.000000e+00 : f32
    %420 = vector.broadcast %cst_125 : f32 to vector<2x32xf32>
    %421 = arith.subf %420, %413 : vector<2x32xf32>
    %422 = arith.mulf %421, %419 : vector<2x32xf32>
    %423 = arith.mulf %413, %354 : vector<2x32xf32>
    %424 = arith.addf %422, %423 : vector<2x32xf32>
    %c6_i32_126 = arith.constant 6 : i32
    %425 = arith.cmpi eq, %c5_i32, %c6_i32_126 : i32
    %426 = arith.extui %425 : i1 to i32
    %c0_i32_127 = arith.constant 0 : i32
    %427 = arith.cmpi ne, %426, %c0_i32_127 : i32
    scf.if %427 {
      %578 = vector.extract_strided_slice %424 {offsets = [1, 0], sizes = [1, 32], strides = [1, 1]} : vector<2x32xf32> to vector<1x32xf32>
      %c0_183 = arith.constant 0 : index
      %c0_184 = arith.constant 0 : index
      %579 = vector.load %arg10[%c0_183, %c0_184] : memref<2x32xf32, #tpu.memory_space<vmem>>, vector<1x32xf32>
      tpu.vector_store %arg10[%c0_183, %c0_184], %578 {strides = array<i32>} : memref<2x32xf32, #tpu.memory_space<vmem>>, vector<1x32xf32>,
    } else {
    }
    %c7_i32_128 = arith.constant 7 : i32
    %428 = arith.cmpi eq, %c5_i32, %c7_i32_128 : i32
    %429 = arith.extui %428 : i1 to i32
    %c0_i32_129 = arith.constant 0 : i32
    %430 = arith.cmpi ne, %429, %c0_i32_129 : i32
    scf.if %430 {
      %578 = vector.extract_strided_slice %424 {offsets = [1, 0], sizes = [1, 32], strides = [1, 1]} : vector<2x32xf32> to vector<1x32xf32>
      %c1 = arith.constant 1 : index
      %c0_183 = arith.constant 0 : index
      %579 = vector.load %arg10[%c1, %c0_183] : memref<2x32xf32, #tpu.memory_space<vmem>>, vector<1x32xf32>
      tpu.vector_store %arg10[%c1, %c0_183], %578 {strides = array<i32>} : memref<2x32xf32, #tpu.memory_space<vmem>>, vector<1x32xf32>,
    } else {
    }
    %c6_i32_130 = arith.constant 6 : i32
    %431 = arith.index_cast %c6_i32_130 : i32 to index
    %c0_131 = arith.constant 0 : index
    %c0_132 = arith.constant 0 : index
    %432 = vector.load %arg0[%431, %c0_131, %c0_132] : memref<8x2x96xf32, #tpu.memory_space<vmem>>, vector<1x2x96xf32>
    %433 = vector.shape_cast %432 : vector<1x2x96xf32> to vector<2x96xf32>
    %c0_133 = arith.constant 0 : index
    %c0_134 = arith.constant 0 : index
    %434 = vector.load %arg1[%c0_133, %c0_134] : memref<32x96xf32, #tpu.memory_space<vmem>>, vector<32x96xf32>
    %cst_135 = arith.constant dense<0.000000e+00> : vector<2x96xf32>
    %435 = tpu.matmul %392, %434, %cst_135 {dimension_numbers = #tpu.dot_dimension_numbers<[1], [0], [0], [1], [0, 0, 1, 1], [], []>} : vector<2x32xf32>, vector<32x96xf32>, vector<2x96xf32> -> vector<2x96xf32>
    %436 = vector.extract_strided_slice %433 {offsets = [0, 0], sizes = [2, 32], strides = [1, 1]} : vector<2x96xf32> to vector<2x32xf32>
    %437 = vector.extract_strided_slice %435 {offsets = [0, 0], sizes = [2, 32], strides = [1, 1]} : vector<2x96xf32> to vector<2x32xf32>
    %438 = arith.addf %436, %437 : vector<2x32xf32>
    %439 = arith.negf %438 : vector<2x32xf32>
    %440 = math.exp %439 : vector<2x32xf32>
    %cst_136 = arith.constant 1.000000e+00 : f32
    %441 = vector.broadcast %cst_136 : f32 to vector<2x32xf32>
    %442 = arith.addf %441, %440 : vector<2x32xf32>
    %443 = arith.divf %441, %442 : vector<2x32xf32>
    %444 = vector.extract_strided_slice %433 {offsets = [0, 32], sizes = [2, 32], strides = [1, 1]} : vector<2x96xf32> to vector<2x32xf32>
    %445 = vector.extract_strided_slice %435 {offsets = [0, 32], sizes = [2, 32], strides = [1, 1]} : vector<2x96xf32> to vector<2x32xf32>
    %446 = arith.addf %444, %445 : vector<2x32xf32>
    %447 = arith.negf %446 : vector<2x32xf32>
    %448 = math.exp %447 : vector<2x32xf32>
    %cst_137 = arith.constant 1.000000e+00 : f32
    %449 = vector.broadcast %cst_137 : f32 to vector<2x32xf32>
    %450 = arith.addf %449, %448 : vector<2x32xf32>
    %451 = arith.divf %449, %450 : vector<2x32xf32>
    %452 = vector.extract_strided_slice %433 {offsets = [0, 64], sizes = [2, 32], strides = [1, 1]} : vector<2x96xf32> to vector<2x32xf32>
    %453 = vector.extract_strided_slice %435 {offsets = [0, 64], sizes = [2, 32], strides = [1, 1]} : vector<2x96xf32> to vector<2x32xf32>
    %454 = arith.addf %453, %2 : vector<2x32xf32>
    %455 = arith.mulf %443, %454 : vector<2x32xf32>
    %456 = arith.addf %452, %455 : vector<2x32xf32>
    %457 = math.tanh %456 : vector<2x32xf32>
    %cst_138 = arith.constant 1.000000e+00 : f32
    %458 = vector.broadcast %cst_138 : f32 to vector<2x32xf32>
    %459 = arith.subf %458, %451 : vector<2x32xf32>
    %460 = arith.mulf %459, %457 : vector<2x32xf32>
    %461 = arith.mulf %451, %392 : vector<2x32xf32>
    %462 = arith.addf %460, %461 : vector<2x32xf32>
    %c0_139 = arith.constant 0 : index
    %c0_140 = arith.constant 0 : index
    %463 = vector.load %arg3[%c0_139, %c0_140] : memref<32x96xf32, #tpu.memory_space<vmem>>, vector<32x96xf32>
    %cst_141 = arith.constant dense<0.000000e+00> : vector<2x96xf32>
    %464 = tpu.matmul %462, %463, %cst_141 {dimension_numbers = #tpu.dot_dimension_numbers<[1], [0], [0], [1], [0, 0, 1, 1], [], []>} : vector<2x32xf32>, vector<32x96xf32>, vector<2x96xf32> -> vector<2x96xf32>
    %465 = arith.addf %464, %8 : vector<2x96xf32>
    %c0_142 = arith.constant 0 : index
    %c0_143 = arith.constant 0 : index
    %466 = vector.load %arg5[%c0_142, %c0_143] : memref<32x96xf32, #tpu.memory_space<vmem>>, vector<32x96xf32>
    %cst_144 = arith.constant dense<0.000000e+00> : vector<2x96xf32>
    %467 = tpu.matmul %424, %466, %cst_144 {dimension_numbers = #tpu.dot_dimension_numbers<[1], [0], [0], [1], [0, 0, 1, 1], [], []>} : vector<2x32xf32>, vector<32x96xf32>, vector<2x96xf32> -> vector<2x96xf32>
    %468 = vector.extract_strided_slice %465 {offsets = [0, 0], sizes = [2, 32], strides = [1, 1]} : vector<2x96xf32> to vector<2x32xf32>
    %469 = vector.extract_strided_slice %467 {offsets = [0, 0], sizes = [2, 32], strides = [1, 1]} : vector<2x96xf32> to vector<2x32xf32>
    %470 = arith.addf %468, %469 : vector<2x32xf32>
    %471 = arith.negf %470 : vector<2x32xf32>
    %472 = math.exp %471 : vector<2x32xf32>
    %cst_145 = arith.constant 1.000000e+00 : f32
    %473 = vector.broadcast %cst_145 : f32 to vector<2x32xf32>
    %474 = arith.addf %473, %472 : vector<2x32xf32>
    %475 = arith.divf %473, %474 : vector<2x32xf32>
    %476 = vector.extract_strided_slice %465 {offsets = [0, 32], sizes = [2, 32], strides = [1, 1]} : vector<2x96xf32> to vector<2x32xf32>
    %477 = vector.extract_strided_slice %467 {offsets = [0, 32], sizes = [2, 32], strides = [1, 1]} : vector<2x96xf32> to vector<2x32xf32>
    %478 = arith.addf %476, %477 : vector<2x32xf32>
    %479 = arith.negf %478 : vector<2x32xf32>
    %480 = math.exp %479 : vector<2x32xf32>
    %cst_146 = arith.constant 1.000000e+00 : f32
    %481 = vector.broadcast %cst_146 : f32 to vector<2x32xf32>
    %482 = arith.addf %481, %480 : vector<2x32xf32>
    %483 = arith.divf %481, %482 : vector<2x32xf32>
    %484 = vector.extract_strided_slice %465 {offsets = [0, 64], sizes = [2, 32], strides = [1, 1]} : vector<2x96xf32> to vector<2x32xf32>
    %485 = vector.extract_strided_slice %467 {offsets = [0, 64], sizes = [2, 32], strides = [1, 1]} : vector<2x96xf32> to vector<2x32xf32>
    %486 = arith.addf %485, %5 : vector<2x32xf32>
    %487 = arith.mulf %475, %486 : vector<2x32xf32>
    %488 = arith.addf %484, %487 : vector<2x32xf32>
    %489 = math.tanh %488 : vector<2x32xf32>
    %cst_147 = arith.constant 1.000000e+00 : f32
    %490 = vector.broadcast %cst_147 : f32 to vector<2x32xf32>
    %491 = arith.subf %490, %483 : vector<2x32xf32>
    %492 = arith.mulf %491, %489 : vector<2x32xf32>
    %493 = arith.mulf %483, %424 : vector<2x32xf32>
    %494 = arith.addf %492, %493 : vector<2x32xf32>
    %c6_i32_148 = arith.constant 6 : i32
    %495 = arith.cmpi eq, %c6_i32_130, %c6_i32_148 : i32
    %496 = arith.extui %495 : i1 to i32
    %c0_i32_149 = arith.constant 0 : i32
    %497 = arith.cmpi ne, %496, %c0_i32_149 : i32
    scf.if %497 {
      %578 = vector.extract_strided_slice %494 {offsets = [1, 0], sizes = [1, 32], strides = [1, 1]} : vector<2x32xf32> to vector<1x32xf32>
      %c0_183 = arith.constant 0 : index
      %c0_184 = arith.constant 0 : index
      %579 = vector.load %arg10[%c0_183, %c0_184] : memref<2x32xf32, #tpu.memory_space<vmem>>, vector<1x32xf32>
      tpu.vector_store %arg10[%c0_183, %c0_184], %578 {strides = array<i32>} : memref<2x32xf32, #tpu.memory_space<vmem>>, vector<1x32xf32>,
    } else {
    }
    %c7_i32_150 = arith.constant 7 : i32
    %498 = arith.cmpi eq, %c6_i32_130, %c7_i32_150 : i32
    %499 = arith.extui %498 : i1 to i32
    %c0_i32_151 = arith.constant 0 : i32
    %500 = arith.cmpi ne, %499, %c0_i32_151 : i32
    scf.if %500 {
      %578 = vector.extract_strided_slice %494 {offsets = [1, 0], sizes = [1, 32], strides = [1, 1]} : vector<2x32xf32> to vector<1x32xf32>
      %c1 = arith.constant 1 : index
      %c0_183 = arith.constant 0 : index
      %579 = vector.load %arg10[%c1, %c0_183] : memref<2x32xf32, #tpu.memory_space<vmem>>, vector<1x32xf32>
      tpu.vector_store %arg10[%c1, %c0_183], %578 {strides = array<i32>} : memref<2x32xf32, #tpu.memory_space<vmem>>, vector<1x32xf32>,
    } else {
    }
    %c7_i32_152 = arith.constant 7 : i32
    %501 = arith.index_cast %c7_i32_152 : i32 to index
    %c0_153 = arith.constant 0 : index
    %c0_154 = arith.constant 0 : index
    %502 = vector.load %arg0[%501, %c0_153, %c0_154] : memref<8x2x96xf32, #tpu.memory_space<vmem>>, vector<1x2x96xf32>
    %503 = vector.shape_cast %502 : vector<1x2x96xf32> to vector<2x96xf32>
    %c0_155 = arith.constant 0 : index
    %c0_156 = arith.constant 0 : index
    %504 = vector.load %arg1[%c0_155, %c0_156] : memref<32x96xf32, #tpu.memory_space<vmem>>, vector<32x96xf32>
    %cst_157 = arith.constant dense<0.000000e+00> : vector<2x96xf32>
    %505 = tpu.matmul %462, %504, %cst_157 {dimension_numbers = #tpu.dot_dimension_numbers<[1], [0], [0], [1], [0, 0, 1, 1], [], []>} : vector<2x32xf32>, vector<32x96xf32>, vector<2x96xf32> -> vector<2x96xf32>
    %506 = vector.extract_strided_slice %503 {offsets = [0, 0], sizes = [2, 32], strides = [1, 1]} : vector<2x96xf32> to vector<2x32xf32>
    %507 = vector.extract_strided_slice %505 {offsets = [0, 0], sizes = [2, 32], strides = [1, 1]} : vector<2x96xf32> to vector<2x32xf32>
    %508 = arith.addf %506, %507 : vector<2x32xf32>
    %509 = arith.negf %508 : vector<2x32xf32>
    %510 = math.exp %509 : vector<2x32xf32>
    %cst_158 = arith.constant 1.000000e+00 : f32
    %511 = vector.broadcast %cst_158 : f32 to vector<2x32xf32>
    %512 = arith.addf %511, %510 : vector<2x32xf32>
    %513 = arith.divf %511, %512 : vector<2x32xf32>
    %514 = vector.extract_strided_slice %503 {offsets = [0, 32], sizes = [2, 32], strides = [1, 1]} : vector<2x96xf32> to vector<2x32xf32>
    %515 = vector.extract_strided_slice %505 {offsets = [0, 32], sizes = [2, 32], strides = [1, 1]} : vector<2x96xf32> to vector<2x32xf32>
    %516 = arith.addf %514, %515 : vector<2x32xf32>
    %517 = arith.negf %516 : vector<2x32xf32>
    %518 = math.exp %517 : vector<2x32xf32>
    %cst_159 = arith.constant 1.000000e+00 : f32
    %519 = vector.broadcast %cst_159 : f32 to vector<2x32xf32>
    %520 = arith.addf %519, %518 : vector<2x32xf32>
    %521 = arith.divf %519, %520 : vector<2x32xf32>
    %522 = vector.extract_strided_slice %503 {offsets = [0, 64], sizes = [2, 32], strides = [1, 1]} : vector<2x96xf32> to vector<2x32xf32>
    %523 = vector.extract_strided_slice %505 {offsets = [0, 64], sizes = [2, 32], strides = [1, 1]} : vector<2x96xf32> to vector<2x32xf32>
    %524 = arith.addf %523, %2 : vector<2x32xf32>
    %525 = arith.mulf %513, %524 : vector<2x32xf32>
    %526 = arith.addf %522, %525 : vector<2x32xf32>
    %527 = math.tanh %526 : vector<2x32xf32>
    %cst_160 = arith.constant 1.000000e+00 : f32
    %528 = vector.broadcast %cst_160 : f32 to vector<2x32xf32>
    %529 = arith.subf %528, %521 : vector<2x32xf32>
    %530 = arith.mulf %529, %527 : vector<2x32xf32>
    %531 = arith.mulf %521, %462 : vector<2x32xf32>
    %532 = arith.addf %530, %531 : vector<2x32xf32>
    %c0_161 = arith.constant 0 : index
    %c0_162 = arith.constant 0 : index
    %533 = vector.load %arg3[%c0_161, %c0_162] : memref<32x96xf32, #tpu.memory_space<vmem>>, vector<32x96xf32>
    %cst_163 = arith.constant dense<0.000000e+00> : vector<2x96xf32>
    %534 = tpu.matmul %532, %533, %cst_163 {dimension_numbers = #tpu.dot_dimension_numbers<[1], [0], [0], [1], [0, 0, 1, 1], [], []>} : vector<2x32xf32>, vector<32x96xf32>, vector<2x96xf32> -> vector<2x96xf32>
    %535 = arith.addf %534, %8 : vector<2x96xf32>
    %c0_164 = arith.constant 0 : index
    %c0_165 = arith.constant 0 : index
    %536 = vector.load %arg5[%c0_164, %c0_165] : memref<32x96xf32, #tpu.memory_space<vmem>>, vector<32x96xf32>
    %cst_166 = arith.constant dense<0.000000e+00> : vector<2x96xf32>
    %537 = tpu.matmul %494, %536, %cst_166 {dimension_numbers = #tpu.dot_dimension_numbers<[1], [0], [0], [1], [0, 0, 1, 1], [], []>} : vector<2x32xf32>, vector<32x96xf32>, vector<2x96xf32> -> vector<2x96xf32>
    %538 = vector.extract_strided_slice %535 {offsets = [0, 0], sizes = [2, 32], strides = [1, 1]} : vector<2x96xf32> to vector<2x32xf32>
    %539 = vector.extract_strided_slice %537 {offsets = [0, 0], sizes = [2, 32], strides = [1, 1]} : vector<2x96xf32> to vector<2x32xf32>
    %540 = arith.addf %538, %539 : vector<2x32xf32>
    %541 = arith.negf %540 : vector<2x32xf32>
    %542 = math.exp %541 : vector<2x32xf32>
    %cst_167 = arith.constant 1.000000e+00 : f32
    %543 = vector.broadcast %cst_167 : f32 to vector<2x32xf32>
    %544 = arith.addf %543, %542 : vector<2x32xf32>
    %545 = arith.divf %543, %544 : vector<2x32xf32>
    %546 = vector.extract_strided_slice %535 {offsets = [0, 32], sizes = [2, 32], strides = [1, 1]} : vector<2x96xf32> to vector<2x32xf32>
    %547 = vector.extract_strided_slice %537 {offsets = [0, 32], sizes = [2, 32], strides = [1, 1]} : vector<2x96xf32> to vector<2x32xf32>
    %548 = arith.addf %546, %547 : vector<2x32xf32>
    %549 = arith.negf %548 : vector<2x32xf32>
    %550 = math.exp %549 : vector<2x32xf32>
    %cst_168 = arith.constant 1.000000e+00 : f32
    %551 = vector.broadcast %cst_168 : f32 to vector<2x32xf32>
    %552 = arith.addf %551, %550 : vector<2x32xf32>
    %553 = arith.divf %551, %552 : vector<2x32xf32>
    %554 = vector.extract_strided_slice %535 {offsets = [0, 64], sizes = [2, 32], strides = [1, 1]} : vector<2x96xf32> to vector<2x32xf32>
    %555 = vector.extract_strided_slice %537 {offsets = [0, 64], sizes = [2, 32], strides = [1, 1]} : vector<2x96xf32> to vector<2x32xf32>
    %556 = arith.addf %555, %5 : vector<2x32xf32>
    %557 = arith.mulf %545, %556 : vector<2x32xf32>
    %558 = arith.addf %554, %557 : vector<2x32xf32>
    %559 = math.tanh %558 : vector<2x32xf32>
    %cst_169 = arith.constant 1.000000e+00 : f32
    %560 = vector.broadcast %cst_169 : f32 to vector<2x32xf32>
    %561 = arith.subf %560, %553 : vector<2x32xf32>
    %562 = arith.mulf %561, %559 : vector<2x32xf32>
    %563 = arith.mulf %553, %494 : vector<2x32xf32>
    %564 = arith.addf %562, %563 : vector<2x32xf32>
    %c6_i32_170 = arith.constant 6 : i32
    %565 = arith.cmpi eq, %c7_i32_152, %c6_i32_170 : i32
    %566 = arith.extui %565 : i1 to i32
    %c0_i32_171 = arith.constant 0 : i32
    %567 = arith.cmpi ne, %566, %c0_i32_171 : i32
    scf.if %567 {
      %578 = vector.extract_strided_slice %564 {offsets = [1, 0], sizes = [1, 32], strides = [1, 1]} : vector<2x32xf32> to vector<1x32xf32>
      %c0_183 = arith.constant 0 : index
      %c0_184 = arith.constant 0 : index
      %579 = vector.load %arg10[%c0_183, %c0_184] : memref<2x32xf32, #tpu.memory_space<vmem>>, vector<1x32xf32>
      tpu.vector_store %arg10[%c0_183, %c0_184], %578 {strides = array<i32>} : memref<2x32xf32, #tpu.memory_space<vmem>>, vector<1x32xf32>,
    } else {
    }
    %c7_i32_172 = arith.constant 7 : i32
    %568 = arith.cmpi eq, %c7_i32_152, %c7_i32_172 : i32
    %569 = arith.extui %568 : i1 to i32
    %c0_i32_173 = arith.constant 0 : i32
    %570 = arith.cmpi ne, %569, %c0_i32_173 : i32
    scf.if %570 {
      %578 = vector.extract_strided_slice %564 {offsets = [1, 0], sizes = [1, 32], strides = [1, 1]} : vector<2x32xf32> to vector<1x32xf32>
      %c1 = arith.constant 1 : index
      %c0_183 = arith.constant 0 : index
      %579 = vector.load %arg10[%c1, %c0_183] : memref<2x32xf32, #tpu.memory_space<vmem>>, vector<1x32xf32>
      tpu.vector_store %arg10[%c1, %c0_183], %578 {strides = array<i32>} : memref<2x32xf32, #tpu.memory_space<vmem>>, vector<1x32xf32>,
    } else {
    }
    %c8_i32 = arith.constant 8 : i32
    %c0_174 = arith.constant 0 : index
    %c0_175 = arith.constant 0 : index
    %571 = vector.load %arg10[%c0_174, %c0_175] : memref<2x32xf32, #tpu.memory_space<vmem>>, vector<2x32xf32>
    %c0_176 = arith.constant 0 : index
    %c0_177 = arith.constant 0 : index
    %572 = vector.load %arg7[%c0_176, %c0_177] : memref<32x4xf32, #tpu.memory_space<vmem>>, vector<32x4xf32>
    %cst_178 = arith.constant dense<0.000000e+00> : vector<2x4xf32>
    %573 = tpu.matmul %571, %572, %cst_178 {dimension_numbers = #tpu.dot_dimension_numbers<[1], [0], [0], [1], [0, 0, 1, 1], [], []>} : vector<2x32xf32>, vector<32x4xf32>, vector<2x4xf32> -> vector<2x4xf32>
    %c0_179 = arith.constant 0 : index
    %c0_180 = arith.constant 0 : index
    %574 = vector.load %arg8[%c0_179, %c0_180] : memref<1x4xf32, #tpu.memory_space<vmem>>, vector<1x4xf32>
    %575 = vector.broadcast %574 : vector<1x4xf32> to vector<2x4xf32>
    %576 = arith.addf %573, %575 : vector<2x4xf32>
    %c0_181 = arith.constant 0 : index
    %c0_182 = arith.constant 0 : index
    %577 = vector.load %arg9[%c0_181, %c0_182] : memref<2x4xf32, #tpu.memory_space<vmem>>, vector<2x4xf32>
    tpu.vector_store %arg9[%c0_181, %c0_182], %576 {strides = array<i32>} : memref<2x4xf32, #tpu.memory_space<vmem>>, vector<2x4xf32>,
    return
  }
}

</mosaic_0001>

<llo_original>
// kernel: model_forward.1
$region0: #{model_forward.1}
  #allocation0 [shape = 'u32[]', space=smem, size = 0x4, offset = 0x4, fixed_abs, tag = 'smem constant byte address 0x4 - core index']
  #allocation1 [shape = 'u32[72,128]{1,0:T(1,128)}', space=vmem, size = 0x9000, scoped, tag = 'internal scratch']
  #allocation2 [shape = 'f32[2,32]{1,0:T(2,128)}', space=vmem, size = 0x400, scoped, tag = 'scratch operand']
  %s0 = inlined_call_operand.vmem [shape: f32[8,2,96], index: 0, kind: input, shape index: {}]
  %s1 = inlined_call_operand.vmem [shape: f32[32,96], index: 1, kind: input, shape index: {}]
  %s2 = inlined_call_operand.vmem [shape: f32[1,32], index: 2, kind: input, shape index: {}]
  %s3 = inlined_call_operand.vmem [shape: f32[32,96], index: 3, kind: input, shape index: {}]
  %s4 = inlined_call_operand.vmem [shape: f32[1,96], index: 4, kind: input, shape index: {}]
  %s5 = inlined_call_operand.vmem [shape: f32[32,96], index: 5, kind: input, shape index: {}]
  %s6 = inlined_call_operand.vmem [shape: f32[1,32], index: 6, kind: input, shape index: {}]
  %s7 = inlined_call_operand.vmem [shape: f32[32,4], index: 7, kind: input, shape index: {}]
  %s8 = inlined_call_operand.vmem [shape: f32[1,4], index: 8, kind: input, shape index: {}]
  %s9 = inlined_call_operand.hbm [shape: f32[2,4], index: 9, kind: output, shape index: {}]
  %s10 = sld [smem:[#allocation0]]
  $region46: #{model_forward.1} parent=0
    _
  %s12 = ssub.s32 1, %s10
  %s13 = scalar_select 0, %s12, %s10
  $region1: #{model_forward.1} parent=0
    #allocation3 [shape = 'u8[1024]{0}', space=vmem, size = 0x400, scoped, tag = 'output window, operand 0, single buffered']
    #allocation4 [shape = 's32[1]{0}', space=sflag, size = 0x4, scoped, tag = 'scoped memory for model_forward.1']
    %14 = vsyncpa [#allocation4], 0
    // Predicated region
    $region2: #{model_forward.1} parent=1 // pred_check
      _
    $region3: #{model_forward.1} parent=1 // pred_check_branch
      %16 = sbr.rel (0) target = $region5
    $region4: #{model_forward.1} parent=1 // pred_region
      _
    $region5: #{model_forward.1} parent=1 // pred_fallthru
      _
    // Predicated region
    $region6: #{model_forward.1} parent=1 // pred_check
      _
    $region7: #{model_forward.1} parent=1 // pred_check_branch
      %18 = sbr.rel (0) target = $region9
    $region8: #{model_forward.1} parent=1 // pred_region
      _
    $region9: #{model_forward.1} parent=1 // pred_fallthru
      _
    // Predicated region
    $region10: #{model_forward.1} parent=1 // pred_check
      _
    $region11: #{model_forward.1} parent=1 // pred_check_branch
      %20 = sbr.rel (0) target = $region13
    $region12: #{model_forward.1} parent=1 // pred_region
      _
    $region13: #{model_forward.1} parent=1 // pred_fallthru
      _
    // Predicated region
    $region14: #{model_forward.1} parent=1 // pred_check
      _
    $region15: #{model_forward.1} parent=1 // pred_check_branch
      %22 = sbr.rel (0) target = $region17
    $region16: #{model_forward.1} parent=1 // pred_region
      _
    $region17: #{model_forward.1} parent=1 // pred_fallthru
      _
    // Predicated region
    $region18: #{model_forward.1} parent=1 // pred_check
      _
    $region19: #{model_forward.1} parent=1 // pred_check_branch
      %24 = sbr.rel (0) target = $region21
    $region20: #{model_forward.1} parent=1 // pred_region
      _
    $region21: #{model_forward.1} parent=1 // pred_fallthru
      _
    // Predicated region
    $region22: #{model_forward.1} parent=1 // pred_check
      _
    $region23: #{model_forward.1} parent=1 // pred_check_branch
      %26 = sbr.rel (0) target = $region25
    $region24: #{model_forward.1} parent=1 // pred_region
      _
    $region25: #{model_forward.1} parent=1 // pred_fallthru
      _
    // Predicated region
    $region26: #{model_forward.1} parent=1 // pred_check
      _
    $region27: #{model_forward.1} parent=1 // pred_check_branch
      %28 = sbr.rel (0) target = $region29
    $region28: #{model_forward.1} parent=1 // pred_region
      _
    $region29: #{model_forward.1} parent=1 // pred_fallthru
      _
    // Predicated region
    $region30: #{model_forward.1} parent=1 // pred_check
      _
    $region31: #{model_forward.1} parent=1 // pred_check_branch
      %30 = sbr.rel (0) target = $region33
    $region32: #{model_forward.1} parent=1 // pred_region
      _
    $region33: #{model_forward.1} parent=1 // pred_fallthru
      _
    // Predicated region
    $region34: #{model_forward.1} parent=1 // pred_check
      _
    $region35: #{model_forward.1} parent=1 // pred_check_branch
      %32 = sbr.rel (0) target = $region37
    $region36: #{model_forward.1} parent=1 // pred_region
      _
    $region37: #{model_forward.1} parent=1 // pred_fallthru
      _
    %v33 = vld [vmem:[%s2] sm:$0x1]
    %v35 = vperm.slane %v33, 0
    %v36 = vld [vmem:[%s6] sm:$0x1]
    %v38 = vperm.slane %v36, 0
    %v39 = vld [vmem:[%s4] sm:$0x1]
    %v41 = vperm.slane %v39, 0
    %v43 = vld [vmem:[%s0] sm:$0x3]
    %v44 = vld [vmem:[%s1] sm:$0xff]
    %v45 = vld [vmem:[%s1 + $0x8] sm:$0xff]
    %v46 = vld [vmem:[%s1 + $0x10] sm:$0xff]
    %v47 = vld [vmem:[%s1 + $0x18] sm:$0xff]
    %vm48 = vcmask 261120
    %v50 = vsel %vm48, 0.0, 0
    %52 = vmatpush.msra.mxu0 0.0
    %53 = vmatpush.msra.mxu0 0.0
    %54 = vmatpush.msra.mxu0 0.0
    %55 = vmatpush.msra.mxu0 0.0
    %56 = vmatpush.msra.mxu0 0.0
    %57 = vmatpush.msra.mxu0 0.0
    %58 = vmatpush.msra.mxu0 0.0
    %59 = vmatpush.msra.mxu0 0.0
    %60 = vmatpush.msra.mxu0 0.0
    %61 = vmatpush.msra.mxu0 0.0
    %62 = vmatpush.msra.mxu0 0.0
    %63 = vmatpush.msra.mxu0 0.0
    %64 = vmatpush.msra.mxu0 %v47
    %65 = vmatpush.msra.mxu0 %v46
    %66 = vmatpush.msra.mxu0 %v45
    %67 = vmatpush.msra.mxu0 %v44
    %68 = vmatmul.f32.gmra.mxu0 %v50
    %v69 = vpop.f32.mrf.mxu0
    %v70 = vadd.f32 0.0, %v69
    %71 = vdwg.mxu0
    %v72 = vadd.f32 %v43, %v70
    %v73 = vxor.u32 %v72, 2147483648
    %v74 = vmul.f32 %v73, 1.442695
    %v75 = vpow.pop %v74
    %v76 = vadd.f32 %v75, 1.0
    %v77 = vrcp.pop %v76
    %v78 = vmul.f32 %v76, %v77
    %v79 = vsub.f32 1.0, %v78
    %v80 = vmul.f32 %v77, %v79
    %v81 = vadd.f32 %v77, %v80
    %vm82 = vweird.f32 %v76
    %vm83 = vweird.f32 %v77
    %vm84 = vmor %vm82, %vm83
    %v85 = vsel %vm84, %v77, %v81
    %v86 = vand.u32 2147483647, %v76
    %vm87 = vcmp.eq.f32.partialorder %v86, 8.507059e+37
    %v88 = vand.u32 %v76, 2147483648
    %v89 = vor.u32 1.1754944e-38, %v88
    %v90 = vsel %vm87, %v89, %v85
    %v91 = vmul.f32 1.0, %v90
    %92 = vrot.lane.b32.xlu0 %v35, 64
    %v93 = vpop.permute.xlu0 %92
    %v95 = vadd.f32 %v70, %v93
    %97 = vrot.lane.b32.xlu0 %v95, 64
    %v98 = vpop.permute.xlu0 %97
    %v100 = vmul.f32 %v91, %v98
    %102 = vrot.lane.b32.xlu0 %v100, 64
    %v103 = vpop.permute.xlu0 %102
    %v105 = vadd.f32 %v43, %v103
    %v106 = vtanh.pop %v105
    %v107 = vsub.f32 1.0, %v91
    %109 = vrot.lane.b32.xlu0 %v106, 96
    %v110 = vpop.permute.xlu0 %109
    %v112 = vmul.f32 %v107, %v110
    %v113 = vmul.f32 %v91, 0.0
    %v114 = vadd.f32 %v112, %v113
    %v115 = vld [vmem:[%s3] sm:$0xff]
    %v116 = vld [vmem:[%s3 + $0x8] sm:$0xff]
    %v117 = vld [vmem:[%s3 + $0x10] sm:$0xff]
    %v118 = vld [vmem:[%s3 + $0x18] sm:$0xff]
    %120 = vrot.lane.b32.xlu0 %v114, 96
    %v121 = vpop.permute.xlu0 %120
    %v122 = vsel %vm48, %v121, 0
    %124 = vmatpush.msra.mxu0 0.0
    %125 = vmatpush.msra.mxu0 0.0
    %126 = vmatpush.msra.mxu0 0.0
    %127 = vmatpush.msra.mxu0 0.0
    %128 = vmatpush.msra.mxu0 0.0
    %129 = vmatpush.msra.mxu0 0.0
    %130 = vmatpush.msra.mxu0 0.0
    %131 = vmatpush.msra.mxu0 0.0
    %132 = vmatpush.msra.mxu0 0.0
    %133 = vmatpush.msra.mxu0 0.0
    %134 = vmatpush.msra.mxu0 0.0
    %135 = vmatpush.msra.mxu0 0.0
    %136 = vmatpush.msra.mxu0 %v118
    %137 = vmatpush.msra.mxu0 %v117
    %138 = vmatpush.msra.mxu0 %v116
    %139 = vmatpush.msra.mxu0 %v115
    %140 = vmatmul.f32.gmra.mxu0 %v122
    %v141 = vpop.f32.mrf.mxu0
    %v142 = vadd.f32 %v41, %v141
    %143 = vdwg.mxu0
    %v144 = vld [vmem:[%s5] sm:$0xff]
    %v145 = vld [vmem:[%s5 + $0x8] sm:$0xff]
    %v146 = vld [vmem:[%s5 + $0x10] sm:$0xff]
    %v147 = vld [vmem:[%s5 + $0x18] sm:$0xff]
    %148 = vmatpush.msra.mxu0 0.0
    %149 = vmatpush.msra.mxu0 0.0
    %150 = vmatpush.msra.mxu0 0.0
    %151 = vmatpush.msra.mxu0 0.0
    %152 = vmatpush.msra.mxu0 0.0
    %153 = vmatpush.msra.mxu0 0.0
    %154 = vmatpush.msra.mxu0 0.0
    %155 = vmatpush.msra.mxu0 0.0
    %156 = vmatpush.msra.mxu0 0.0
    %157 = vmatpush.msra.mxu0 0.0
    %158 = vmatpush.msra.mxu0 0.0
    %159 = vmatpush.msra.mxu0 0.0
    %160 = vmatpush.msra.mxu0 %v147
    %161 = vmatpush.msra.mxu0 %v146
    %162 = vmatpush.msra.mxu0 %v145
    %163 = vmatpush.msra.mxu0 %v144
    %164 = vmatmul.f32.gmra.mxu0 %v50
    %v165 = vpop.f32.mrf.mxu0
    %v166 = vadd.f32 0.0, %v165
    %167 = vdwg.mxu0
    %v168 = vadd.f32 %v142, %v166
    %v169 = vxor.u32 %v168, 2147483648
    %v170 = vmul.f32 %v169, 1.442695
    %v171 = vpow.pop %v170
    %v172 = vadd.f32 %v171, 1.0
    %v173 = vrcp.pop %v172
    %v174 = vmul.f32 %v172, %v173
    %v175 = vsub.f32 1.0, %v174
    %v176 = vmul.f32 %v173, %v175
    %v177 = vadd.f32 %v173, %v176
    %vm178 = vweird.f32 %v172
    %vm179 = vweird.f32 %v173
    %vm180 = vmor %vm178, %vm179
    %v181 = vsel %vm180, %v173, %v177
    %v182 = vand.u32 2147483647, %v172
    %vm183 = vcmp.eq.f32.partialorder %v182, 8.507059e+37
    %v184 = vand.u32 %v172, 2147483648
    %v185 = vor.u32 1.1754944e-38, %v184
    %v186 = vsel %vm183, %v185, %v181
    %v187 = vmul.f32 1.0, %v186
    %188 = vrot.lane.b32.xlu0 %v38, 64
    %v189 = vpop.permute.xlu0 %188
    %v191 = vadd.f32 %v166, %v189
    %193 = vrot.lane.b32.xlu0 %v191, 64
    %v194 = vpop.permute.xlu0 %193
    %v196 = vmul.f32 %v187, %v194
    %198 = vrot.lane.b32.xlu0 %v196, 64
    %v199 = vpop.permute.xlu0 %198
    %v201 = vadd.f32 %v142, %v199
    %v202 = vtanh.pop %v201
    %v203 = vsub.f32 1.0, %v187
    %205 = vrot.lane.b32.xlu0 %v202, 96
    %v206 = vpop.permute.xlu0 %205
    %v208 = vmul.f32 %v203, %v206
    %v209 = vmul.f32 %v187, 0.0
    %v210 = vadd.f32 %v208, %v209
    %s211 = scalar_lea.vmem %s0, 2
    %v212 = vld [vmem:[%s211] sm:$0x3]
    %213 = vmatpush.msra.mxu0 0.0
    %214 = vmatpush.msra.mxu0 0.0
    %215 = vmatpush.msra.mxu0 0.0
    %216 = vmatpush.msra.mxu0 0.0
    %217 = vmatpush.msra.mxu0 0.0
    %218 = vmatpush.msra.mxu0 0.0
    %219 = vmatpush.msra.mxu0 0.0
    %220 = vmatpush.msra.mxu0 0.0
    %221 = vmatpush.msra.mxu0 0.0
    %222 = vmatpush.msra.mxu0 0.0
    %223 = vmatpush.msra.mxu0 0.0
    %224 = vmatpush.msra.mxu0 0.0
    %225 = vmatpush.msra.mxu0 %v47
    %226 = vmatpush.msra.mxu0 %v46
    %227 = vmatpush.msra.mxu0 %v45
    %228 = vmatpush.msra.mxu0 %v44
    %229 = vmatmul.f32.gmra.mxu0 %v122
    %v230 = vpop.f32.mrf.mxu0
    %v231 = vadd.f32 0.0, %v230
    %232 = vdwg.mxu0
    %v233 = vadd.f32 %v212, %v231
    %v234 = vxor.u32 %v233, 2147483648
    %v235 = vmul.f32 %v234, 1.442695
    %v236 = vpow.pop %v235
    %v237 = vadd.f32 %v236, 1.0
    %v238 = vrcp.pop %v237
    %v239 = vmul.f32 %v237, %v238
    %v240 = vsub.f32 1.0, %v239
    %v241 = vmul.f32 %v238, %v240
    %v242 = vadd.f32 %v238, %v241
    %vm243 = vweird.f32 %v237
    %vm244 = vweird.f32 %v238
    %vm245 = vmor %vm243, %vm244
    %v246 = vsel %vm245, %v238, %v242
    %v247 = vand.u32 2147483647, %v237
    %vm248 = vcmp.eq.f32.partialorder %v247, 8.507059e+37
    %v249 = vand.u32 %v237, 2147483648
    %v250 = vor.u32 1.1754944e-38, %v249
    %v251 = vsel %vm248, %v250, %v246
    %v252 = vmul.f32 1.0, %v251
    %v253 = vadd.f32 %v231, %v93
    %255 = vrot.lane.b32.xlu0 %v253, 64
    %v256 = vpop.permute.xlu0 %255
    %v258 = vmul.f32 %v252, %v256
    %260 = vrot.lane.b32.xlu0 %v258, 64
    %v261 = vpop.permute.xlu0 %260
    %v263 = vadd.f32 %v212, %v261
    %v264 = vtanh.pop %v263
    %v265 = vsub.f32 1.0, %v252
    %267 = vrot.lane.b32.xlu0 %v264, 96
    %v268 = vpop.permute.xlu0 %267
    %v270 = vmul.f32 %v265, %v268
    %v271 = vmul.f32 %v252, %v114
    %v272 = vadd.f32 %v270, %v271
    %274 = vrot.lane.b32.xlu0 %v272, 96
    %v275 = vpop.permute.xlu0 %274
    %v276 = vsel %vm48, %v275, 0
    %278 = vmatpush.msra.mxu0 0.0
    %279 = vmatpush.msra.mxu0 0.0
    %280 = vmatpush.msra.mxu0 0.0
    %281 = vmatpush.msra.mxu0 0.0
    %282 = vmatpush.msra.mxu0 0.0
    %283 = vmatpush.msra.mxu0 0.0
    %284 = vmatpush.msra.mxu0 0.0
    %285 = vmatpush.msra.mxu0 0.0
    %286 = vmatpush.msra.mxu0 0.0
    %287 = vmatpush.msra.mxu0 0.0
    %288 = vmatpush.msra.mxu0 0.0
    %289 = vmatpush.msra.mxu0 0.0
    %290 = vmatpush.msra.mxu0 %v118
    %291 = vmatpush.msra.mxu0 %v117
    %292 = vmatpush.msra.mxu0 %v116
    %293 = vmatpush.msra.mxu0 %v115
    %294 = vmatmul.f32.gmra.mxu0 %v276
    %v295 = vpop.f32.mrf.mxu0
    %v296 = vadd.f32 %v41, %v295
    %297 = vdwg.mxu0
    %299 = vrot.lane.b32.xlu0 %v210, 96
    %v300 = vpop.permute.xlu0 %299
    %v301 = vsel %vm48, %v300, 0
    %303 = vmatpush.msra.mxu0 0.0
    %304 = vmatpush.msra.mxu0 0.0
    %305 = vmatpush.msra.mxu0 0.0
    %306 = vmatpush.msra.mxu0 0.0
    %307 = vmatpush.msra.mxu0 0.0
    %308 = vmatpush.msra.mxu0 0.0
    %309 = vmatpush.msra.mxu0 0.0
    %310 = vmatpush.msra.mxu0 0.0
    %311 = vmatpush.msra.mxu0 0.0
    %312 = vmatpush.msra.mxu0 0.0
    %313 = vmatpush.msra.mxu0 0.0
    %314 = vmatpush.msra.mxu0 0.0
    %315 = vmatpush.msra.mxu0 %v147
    %316 = vmatpush.msra.mxu0 %v146
    %317 = vmatpush.msra.mxu0 %v145
    %318 = vmatpush.msra.mxu0 %v144
    %319 = vmatmul.f32.gmra.mxu0 %v301
    %v320 = vpop.f32.mrf.mxu0
    %v321 = vadd.f32 0.0, %v320
    %322 = vdwg.mxu0
    %v323 = vadd.f32 %v296, %v321
    %v324 = vxor.u32 %v323, 2147483648
    %v325 = vmul.f32 %v324, 1.442695
    %v326 = vpow.pop %v325
    %v327 = vadd.f32 %v326, 1.0
    %v328 = vrcp.pop %v327
    %v329 = vmul.f32 %v327, %v328
    %v330 = vsub.f32 1.0, %v329
    %v331 = vmul.f32 %v328, %v330
    %v332 = vadd.f32 %v328, %v331
    %vm333 = vweird.f32 %v327
    %vm334 = vweird.f32 %v328
    %vm335 = vmor %vm333, %vm334
    %v336 = vsel %vm335, %v328, %v332
    %v337 = vand.u32 2147483647, %v327
    %vm338 = vcmp.eq.f32.partialorder %v337, 8.507059e+37
    %v339 = vand.u32 %v327, 2147483648
    %v340 = vor.u32 1.1754944e-38, %v339
    %v341 = vsel %vm338, %v340, %v336
    %v342 = vmul.f32 1.0, %v341
    %v343 = vadd.f32 %v321, %v189
    %345 = vrot.lane.b32.xlu0 %v343, 64
    %v346 = vpop.permute.xlu0 %345
    %v348 = vmul.f32 %v342, %v346
    %350 = vrot.lane.b32.xlu0 %v348, 64
    %v351 = vpop.permute.xlu0 %350
    %v353 = vadd.f32 %v296, %v351
    %v354 = vtanh.pop %v353
    %v355 = vsub.f32 1.0, %v342
    %357 = vrot.lane.b32.xlu0 %v354, 96
    %v358 = vpop.permute.xlu0 %357
    %v360 = vmul.f32 %v355, %v358
    %v361 = vmul.f32 %v342, %v210
    %v362 = vadd.f32 %v360, %v361
    %s363 = scalar_lea.vmem %s0, 4
    %v364 = vld [vmem:[%s363] sm:$0x3]
    %365 = vmatpush.msra.mxu0 0.0
    %366 = vmatpush.msra.mxu0 0.0
    %367 = vmatpush.msra.mxu0 0.0
    %368 = vmatpush.msra.mxu0 0.0
    %369 = vmatpush.msra.mxu0 0.0
    %370 = vmatpush.msra.mxu0 0.0
    %371 = vmatpush.msra.mxu0 0.0
    %372 = vmatpush.msra.mxu0 0.0
    %373 = vmatpush.msra.mxu0 0.0
    %374 = vmatpush.msra.mxu0 0.0
    %375 = vmatpush.msra.mxu0 0.0
    %376 = vmatpush.msra.mxu0 0.0
    %377 = vmatpush.msra.mxu0 %v47
    %378 = vmatpush.msra.mxu0 %v46
    %379 = vmatpush.msra.mxu0 %v45
    %380 = vmatpush.msra.mxu0 %v44
    %381 = vmatmul.f32.gmra.mxu0 %v276
    %v382 = vpop.f32.mrf.mxu0
    %v383 = vadd.f32 0.0, %v382
    %384 = vdwg.mxu0
    %v385 = vadd.f32 %v364, %v383
    %v386 = vxor.u32 %v385, 2147483648
    %v387 = vmul.f32 %v386, 1.442695
    %v388 = vpow.pop %v387
    %v389 = vadd.f32 %v388, 1.0
    %v390 = vrcp.pop %v389
    %v391 = vmul.f32 %v389, %v390
    %v392 = vsub.f32 1.0, %v391
    %v393 = vmul.f32 %v390, %v392
    %v394 = vadd.f32 %v390, %v393
    %vm395 = vweird.f32 %v389
    %vm396 = vweird.f32 %v390
    %vm397 = vmor %vm395, %vm396
    %v398 = vsel %vm397, %v390, %v394
    %v399 = vand.u32 2147483647, %v389
    %vm400 = vcmp.eq.f32.partialorder %v399, 8.507059e+37
    %v401 = vand.u32 %v389, 2147483648
    %v402 = vor.u32 1.1754944e-38, %v401
    %v403 = vsel %vm400, %v402, %v398
    %v404 = vmul.f32 1.0, %v403
    %v405 = vadd.f32 %v383, %v93
    %407 = vrot.lane.b32.xlu0 %v405, 64
    %v408 = vpop.permute.xlu0 %407
    %v410 = vmul.f32 %v404, %v408
    %412 = vrot.lane.b32.xlu0 %v410, 64
    %v413 = vpop.permute.xlu0 %412
    %v415 = vadd.f32 %v364, %v413
    %v416 = vtanh.pop %v415
    %v417 = vsub.f32 1.0, %v404
    %419 = vrot.lane.b32.xlu0 %v416, 96
    %v420 = vpop.permute.xlu0 %419
    %v422 = vmul.f32 %v417, %v420
    %v423 = vmul.f32 %v404, %v272
    %v424 = vadd.f32 %v422, %v423
    %426 = vrot.lane.b32.xlu0 %v424, 96
    %v427 = vpop.permute.xlu0 %426
    %v428 = vsel %vm48, %v427, 0
    %430 = vmatpush.msra.mxu0 0.0
    %431 = vmatpush.msra.mxu0 0.0
    %432 = vmatpush.msra.mxu0 0.0
    %433 = vmatpush.msra.mxu0 0.0
    %434 = vmatpush.msra.mxu0 0.0
    %435 = vmatpush.msra.mxu0 0.0
    %436 = vmatpush.msra.mxu0 0.0
    %437 = vmatpush.msra.mxu0 0.0
    %438 = vmatpush.msra.mxu0 0.0
    %439 = vmatpush.msra.mxu0 0.0
    %440 = vmatpush.msra.mxu0 0.0
    %441 = vmatpush.msra.mxu0 0.0
    %442 = vmatpush.msra.mxu0 %v118
    %443 = vmatpush.msra.mxu0 %v117
    %444 = vmatpush.msra.mxu0 %v116
    %445 = vmatpush.msra.mxu0 %v115
    %446 = vmatmul.f32.gmra.mxu0 %v428
    %v447 = vpop.f32.mrf.mxu0
    %v448 = vadd.f32 %v41, %v447
    %449 = vdwg.mxu0
    %451 = vrot.lane.b32.xlu0 %v362, 96
    %v452 = vpop.permute.xlu0 %451
    %v453 = vsel %vm48, %v452, 0
    %455 = vmatpush.msra.mxu0 0.0
    %456 = vmatpush.msra.mxu0 0.0
    %457 = vmatpush.msra.mxu0 0.0
    %458 = vmatpush.msra.mxu0 0.0
    %459 = vmatpush.msra.mxu0 0.0
    %460 = vmatpush.msra.mxu0 0.0
    %461 = vmatpush.msra.mxu0 0.0
    %462 = vmatpush.msra.mxu0 0.0
    %463 = vmatpush.msra.mxu0 0.0
    %464 = vmatpush.msra.mxu0 0.0
    %465 = vmatpush.msra.mxu0 0.0
    %466 = vmatpush.msra.mxu0 0.0
    %467 = vmatpush.msra.mxu0 %v147
    %468 = vmatpush.msra.mxu0 %v146
    %469 = vmatpush.msra.mxu0 %v145
    %470 = vmatpush.msra.mxu0 %v144
    %471 = vmatmul.f32.gmra.mxu0 %v453
    %v472 = vpop.f32.mrf.mxu0
    %v473 = vadd.f32 0.0, %v472
    %474 = vdwg.mxu0
    %v475 = vadd.f32 %v448, %v473
    %v476 = vxor.u32 %v475, 2147483648
    %v477 = vmul.f32 %v476, 1.442695
    %v478 = vpow.pop %v477
    %v479 = vadd.f32 %v478, 1.0
    %v480 = vrcp.pop %v479
    %v481 = vmul.f32 %v479, %v480
    %v482 = vsub.f32 1.0, %v481
    %v483 = vmul.f32 %v480, %v482
    %v484 = vadd.f32 %v480, %v483
    %vm485 = vweird.f32 %v479
    %vm486 = vweird.f32 %v480
    %vm487 = vmor %vm485, %vm486
    %v488 = vsel %vm487, %v480, %v484
    %v489 = vand.u32 2147483647, %v479
    %vm490 = vcmp.eq.f32.partialorder %v489, 8.507059e+37
    %v491 = vand.u32 %v479, 2147483648
    %v492 = vor.u32 1.1754944e-38, %v491
    %v493 = vsel %vm490, %v492, %v488
    %v494 = vmul.f32 1.0, %v493
    %v495 = vadd.f32 %v473, %v189
    %497 = vrot.lane.b32.xlu0 %v495, 64
    %v498 = vpop.permute.xlu0 %497
    %v500 = vmul.f32 %v494, %v498
    %502 = vrot.lane.b32.xlu0 %v500, 64
    %v503 = vpop.permute.xlu0 %502
    %v505 = vadd.f32 %v448, %v503
    %v506 = vtanh.pop %v505
    %v507 = vsub.f32 1.0, %v494
    %509 = vrot.lane.b32.xlu0 %v506, 96
    %v510 = vpop.permute.xlu0 %509
    %v512 = vmul.f32 %v507, %v510
    %v513 = vmul.f32 %v494, %v362
    %v514 = vadd.f32 %v512, %v513
    %s515 = scalar_lea.vmem %s0, 6
    %v516 = vld [vmem:[%s515] sm:$0x3]
    %517 = vmatpush.msra.mxu0 0.0
    %518 = vmatpush.msra.mxu0 0.0
    %519 = vmatpush.msra.mxu0 0.0
    %520 = vmatpush.msra.mxu0 0.0
    %521 = vmatpush.msra.mxu0 0.0
    %522 = vmatpush.msra.mxu0 0.0
    %523 = vmatpush.msra.mxu0 0.0
    %524 = vmatpush.msra.mxu0 0.0
    %525 = vmatpush.msra.mxu0 0.0
    %526 = vmatpush.msra.mxu0 0.0
    %527 = vmatpush.msra.mxu0 0.0
    %528 = vmatpush.msra.mxu0 0.0
    %529 = vmatpush.msra.mxu0 %v47
    %530 = vmatpush.msra.mxu0 %v46
    %531 = vmatpush.msra.mxu0 %v45
    %532 = vmatpush.msra.mxu0 %v44
    %533 = vmatmul.f32.gmra.mxu0 %v428
    %v534 = vpop.f32.mrf.mxu0
    %v535 = vadd.f32 0.0, %v534
    %536 = vdwg.mxu0
    %v537 = vadd.f32 %v516, %v535
    %v538 = vxor.u32 %v537, 2147483648
    %v539 = vmul.f32 %v538, 1.442695
    %v540 = vpow.pop %v539
    %v541 = vadd.f32 %v540, 1.0
    %v542 = vrcp.pop %v541
    %v543 = vmul.f32 %v541, %v542
    %v544 = vsub.f32 1.0, %v543
    %v545 = vmul.f32 %v542, %v544
    %v546 = vadd.f32 %v542, %v545
    %vm547 = vweird.f32 %v541
    %vm548 = vweird.f32 %v542
    %vm549 = vmor %vm547, %vm548
    %v550 = vsel %vm549, %v542, %v546
    %v551 = vand.u32 2147483647, %v541
    %vm552 = vcmp.eq.f32.partialorder %v551, 8.507059e+37
    %v553 = vand.u32 %v541, 2147483648
    %v554 = vor.u32 1.1754944e-38, %v553
    %v555 = vsel %vm552, %v554, %v550
    %v556 = vmul.f32 1.0, %v555
    %v557 = vadd.f32 %v535, %v93
    %559 = vrot.lane.b32.xlu0 %v557, 64
    %v560 = vpop.permute.xlu0 %559
    %v562 = vmul.f32 %v556, %v560
    %564 = vrot.lane.b32.xlu0 %v562, 64
    %v565 = vpop.permute.xlu0 %564
    %v567 = vadd.f32 %v516, %v565
    %v568 = vtanh.pop %v567
    %v569 = vsub.f32 1.0, %v556
    %571 = vrot.lane.b32.xlu0 %v568, 96
    %v572 = vpop.permute.xlu0 %571
    %v574 = vmul.f32 %v569, %v572
    %v575 = vmul.f32 %v556, %v424
    %v576 = vadd.f32 %v574, %v575
    %578 = vrot.lane.b32.xlu0 %v576, 96
    %v579 = vpop.permute.xlu0 %578
    %v580 = vsel %vm48, %v579, 0
    %582 = vmatpush.msra.mxu0 0.0
    %583 = vmatpush.msra.mxu0 0.0
    %584 = vmatpush.msra.mxu0 0.0
    %585 = vmatpush.msra.mxu0 0.0
    %586 = vmatpush.msra.mxu0 0.0
    %587 = vmatpush.msra.mxu0 0.0
    %588 = vmatpush.msra.mxu0 0.0
    %589 = vmatpush.msra.mxu0 0.0
    %590 = vmatpush.msra.mxu0 0.0
    %591 = vmatpush.msra.mxu0 0.0
    %592 = vmatpush.msra.mxu0 0.0
    %593 = vmatpush.msra.mxu0 0.0
    %594 = vmatpush.msra.mxu0 %v118
    %595 = vmatpush.msra.mxu0 %v117
    %596 = vmatpush.msra.mxu0 %v116
    %597 = vmatpush.msra.mxu0 %v115
    %598 = vmatmul.f32.gmra.mxu0 %v580
    %v599 = vpop.f32.mrf.mxu0
    %v600 = vadd.f32 %v41, %v599
    %601 = vdwg.mxu0
    %603 = vrot.lane.b32.xlu0 %v514, 96
    %v604 = vpop.permute.xlu0 %603
    %v605 = vsel %vm48, %v604, 0
    %607 = vmatpush.msra.mxu0 0.0
    %608 = vmatpush.msra.mxu0 0.0
    %609 = vmatpush.msra.mxu0 0.0
    %610 = vmatpush.msra.mxu0 0.0
    %611 = vmatpush.msra.mxu0 0.0
    %612 = vmatpush.msra.mxu0 0.0
    %613 = vmatpush.msra.mxu0 0.0
    %614 = vmatpush.msra.mxu0 0.0
    %615 = vmatpush.msra.mxu0 0.0
    %616 = vmatpush.msra.mxu0 0.0
    %617 = vmatpush.msra.mxu0 0.0
    %618 = vmatpush.msra.mxu0 0.0
    %619 = vmatpush.msra.mxu0 %v147
    %620 = vmatpush.msra.mxu0 %v146
    %621 = vmatpush.msra.mxu0 %v145
    %622 = vmatpush.msra.mxu0 %v144
    %623 = vmatmul.f32.gmra.mxu0 %v605
    %v624 = vpop.f32.mrf.mxu0
    %v625 = vadd.f32 0.0, %v624
    %626 = vdwg.mxu0
    %v627 = vadd.f32 %v600, %v625
    %v628 = vxor.u32 %v627, 2147483648
    %v629 = vmul.f32 %v628, 1.442695
    %v630 = vpow.pop %v629
    %v631 = vadd.f32 %v630, 1.0
    %v632 = vrcp.pop %v631
    %v633 = vmul.f32 %v631, %v632
    %v634 = vsub.f32 1.0, %v633
    %v635 = vmul.f32 %v632, %v634
    %v636 = vadd.f32 %v632, %v635
    %vm637 = vweird.f32 %v631
    %vm638 = vweird.f32 %v632
    %vm639 = vmor %vm637, %vm638
    %v640 = vsel %vm639, %v632, %v636
    %v641 = vand.u32 2147483647, %v631
    %vm642 = vcmp.eq.f32.partialorder %v641, 8.507059e+37
    %v643 = vand.u32 %v631, 2147483648
    %v644 = vor.u32 1.1754944e-38, %v643
    %v645 = vsel %vm642, %v644, %v640
    %v646 = vmul.f32 1.0, %v645
    %v647 = vadd.f32 %v625, %v189
    %649 = vrot.lane.b32.xlu0 %v647, 64
    %v650 = vpop.permute.xlu0 %649
    %v652 = vmul.f32 %v646, %v650
    %654 = vrot.lane.b32.xlu0 %v652, 64
    %v655 = vpop.permute.xlu0 %654
    %v657 = vadd.f32 %v600, %v655
    %v658 = vtanh.pop %v657
    %v659 = vsub.f32 1.0, %v646
    %661 = vrot.lane.b32.xlu0 %v658, 96
    %v662 = vpop.permute.xlu0 %661
    %v664 = vmul.f32 %v659, %v662
    %v665 = vmul.f32 %v646, %v514
    %v666 = vadd.f32 %v664, %v665
    %s667 = scalar_lea.vmem %s0, 8
    %v668 = vld [vmem:[%s667] sm:$0x3]
    %669 = vmatpush.msra.mxu0 0.0
    %670 = vmatpush.msra.mxu0 0.0
    %671 = vmatpush.msra.mxu0 0.0
    %672 = vmatpush.msra.mxu0 0.0
    %673 = vmatpush.msra.mxu0 0.0
    %674 = vmatpush.msra.mxu0 0.0
    %675 = vmatpush.msra.mxu0 0.0
    %676 = vmatpush.msra.mxu0 0.0
    %677 = vmatpush.msra.mxu0 0.0
    %678 = vmatpush.msra.mxu0 0.0
    %679 = vmatpush.msra.mxu0 0.0
    %680 = vmatpush.msra.mxu0 0.0
    %681 = vmatpush.msra.mxu0 %v47
    %682 = vmatpush.msra.mxu0 %v46
    %683 = vmatpush.msra.mxu0 %v45
    %684 = vmatpush.msra.mxu0 %v44
    %685 = vmatmul.f32.gmra.mxu0 %v580
    %v686 = vpop.f32.mrf.mxu0
    %v687 = vadd.f32 0.0, %v686
    %688 = vdwg.mxu0
    %v689 = vadd.f32 %v668, %v687
    %v690 = vxor.u32 %v689, 2147483648
    %v691 = vmul.f32 %v690, 1.442695
    %v692 = vpow.pop %v691
    %v693 = vadd.f32 %v692, 1.0
    %v694 = vrcp.pop %v693
    %v695 = vmul.f32 %v693, %v694
    %v696 = vsub.f32 1.0, %v695
    %v697 = vmul.f32 %v694, %v696
    %v698 = vadd.f32 %v694, %v697
    %vm699 = vweird.f32 %v693
    %vm700 = vweird.f32 %v694
    %vm701 = vmor %vm699, %vm700
    %v702 = vsel %vm701, %v694, %v698
    %v703 = vand.u32 2147483647, %v693
    %vm704 = vcmp.eq.f32.partialorder %v703, 8.507059e+37
    %v705 = vand.u32 %v693, 2147483648
    %v706 = vor.u32 1.1754944e-38, %v705
    %v707 = vsel %vm704, %v706, %v702
    %v708 = vmul.f32 1.0, %v707
    %v709 = vadd.f32 %v687, %v93
    %711 = vrot.lane.b32.xlu0 %v709, 64
    %v712 = vpop.permute.xlu0 %711
    %v714 = vmul.f32 %v708, %v712
    %716 = vrot.lane.b32.xlu0 %v714, 64
    %v717 = vpop.permute.xlu0 %716
    %v719 = vadd.f32 %v668, %v717
    %v720 = vtanh.pop %v719
    %v721 = vsub.f32 1.0, %v708
    %723 = vrot.lane.b32.xlu0 %v720, 96
    %v724 = vpop.permute.xlu0 %723
    %v726 = vmul.f32 %v721, %v724
    %v727 = vmul.f32 %v708, %v576
    %v728 = vadd.f32 %v726, %v727
    %730 = vrot.lane.b32.xlu0 %v728, 96
    %v731 = vpop.permute.xlu0 %730
    %v732 = vsel %vm48, %v731, 0
    %734 = vmatpush.msra.mxu0 0.0
    %735 = vmatpush.msra.mxu0 0.0
    %736 = vmatpush.msra.mxu0 0.0
    %737 = vmatpush.msra.mxu0 0.0
    %738 = vmatpush.msra.mxu0 0.0
    %739 = vmatpush.msra.mxu0 0.0
    %740 = vmatpush.msra.mxu0 0.0
    %741 = vmatpush.msra.mxu0 0.0
    %742 = vmatpush.msra.mxu0 0.0
    %743 = vmatpush.msra.mxu0 0.0
    %744 = vmatpush.msra.mxu0 0.0
    %745 = vmatpush.msra.mxu0 0.0
    %746 = vmatpush.msra.mxu0 %v118
    %747 = vmatpush.msra.mxu0 %v117
    %748 = vmatpush.msra.mxu0 %v116
    %749 = vmatpush.msra.mxu0 %v115
    %750 = vmatmul.f32.gmra.mxu0 %v732
    %v751 = vpop.f32.mrf.mxu0
    %v752 = vadd.f32 %v41, %v751
    %753 = vdwg.mxu0
    %755 = vrot.lane.b32.xlu0 %v666, 96
    %v756 = vpop.permute.xlu0 %755
    %v757 = vsel %vm48, %v756, 0
    %759 = vmatpush.msra.mxu0 0.0
    %760 = vmatpush.msra.mxu0 0.0
    %761 = vmatpush.msra.mxu0 0.0
    %762 = vmatpush.msra.mxu0 0.0
    %763 = vmatpush.msra.mxu0 0.0
    %764 = vmatpush.msra.mxu0 0.0
    %765 = vmatpush.msra.mxu0 0.0
    %766 = vmatpush.msra.mxu0 0.0
    %767 = vmatpush.msra.mxu0 0.0
    %768 = vmatpush.msra.mxu0 0.0
    %769 = vmatpush.msra.mxu0 0.0
    %770 = vmatpush.msra.mxu0 0.0
    %771 = vmatpush.msra.mxu0 %v147
    %772 = vmatpush.msra.mxu0 %v146
    %773 = vmatpush.msra.mxu0 %v145
    %774 = vmatpush.msra.mxu0 %v144
    %775 = vmatmul.f32.gmra.mxu0 %v757
    %v776 = vpop.f32.mrf.mxu0
    %v777 = vadd.f32 0.0, %v776
    %778 = vdwg.mxu0
    %v779 = vadd.f32 %v752, %v777
    %v780 = vxor.u32 %v779, 2147483648
    %v781 = vmul.f32 %v780, 1.442695
    %v782 = vpow.pop %v781
    %v783 = vadd.f32 %v782, 1.0
    %v784 = vrcp.pop %v783
    %v785 = vmul.f32 %v783, %v784
    %v786 = vsub.f32 1.0, %v785
    %v787 = vmul.f32 %v784, %v786
    %v788 = vadd.f32 %v784, %v787
    %vm789 = vweird.f32 %v783
    %vm790 = vweird.f32 %v784
    %vm791 = vmor %vm789, %vm790
    %v792 = vsel %vm791, %v784, %v788
    %v793 = vand.u32 2147483647, %v783
    %vm794 = vcmp.eq.f32.partialorder %v793, 8.507059e+37
    %v795 = vand.u32 %v783, 2147483648
    %v796 = vor.u32 1.1754944e-38, %v795
    %v797 = vsel %vm794, %v796, %v792
    %v798 = vmul.f32 1.0, %v797
    %v799 = vadd.f32 %v777, %v189
    %801 = vrot.lane.b32.xlu0 %v799, 64
    %v802 = vpop.permute.xlu0 %801
    %v804 = vmul.f32 %v798, %v802
    %806 = vrot.lane.b32.xlu0 %v804, 64
    %v807 = vpop.permute.xlu0 %806
    %v809 = vadd.f32 %v752, %v807
    %v810 = vtanh.pop %v809
    %v811 = vsub.f32 1.0, %v798
    %813 = vrot.lane.b32.xlu0 %v810, 96
    %v814 = vpop.permute.xlu0 %813
    %v816 = vmul.f32 %v811, %v814
    %v817 = vmul.f32 %v798, %v666
    %v818 = vadd.f32 %v816, %v817
    %s819 = scalar_lea.vmem %s0, 10
    %v820 = vld [vmem:[%s819] sm:$0x3]
    %821 = vmatpush.msra.mxu0 0.0
    %822 = vmatpush.msra.mxu0 0.0
    %823 = vmatpush.msra.mxu0 0.0
    %824 = vmatpush.msra.mxu0 0.0
    %825 = vmatpush.msra.mxu0 0.0
    %826 = vmatpush.msra.mxu0 0.0
    %827 = vmatpush.msra.mxu0 0.0
    %828 = vmatpush.msra.mxu0 0.0
    %829 = vmatpush.msra.mxu0 0.0
    %830 = vmatpush.msra.mxu0 0.0
    %831 = vmatpush.msra.mxu0 0.0
    %832 = vmatpush.msra.mxu0 0.0
    %833 = vmatpush.msra.mxu0 %v47
    %834 = vmatpush.msra.mxu0 %v46
    %835 = vmatpush.msra.mxu0 %v45
    %836 = vmatpush.msra.mxu0 %v44
    %837 = vmatmul.f32.gmra.mxu0 %v732
    %v838 = vpop.f32.mrf.mxu0
    %v839 = vadd.f32 0.0, %v838
    %840 = vdwg.mxu0
    %v841 = vadd.f32 %v820, %v839
    %v842 = vxor.u32 %v841, 2147483648
    %v843 = vmul.f32 %v842, 1.442695
    %v844 = vpow.pop %v843
    %v845 = vadd.f32 %v844, 1.0
    %v846 = vrcp.pop %v845
    %v847 = vmul.f32 %v845, %v846
    %v848 = vsub.f32 1.0, %v847
    %v849 = vmul.f32 %v846, %v848
    %v850 = vadd.f32 %v846, %v849
    %vm851 = vweird.f32 %v845
    %vm852 = vweird.f32 %v846
    %vm853 = vmor %vm851, %vm852
    %v854 = vsel %vm853, %v846, %v850
    %v855 = vand.u32 2147483647, %v845
    %vm856 = vcmp.eq.f32.partialorder %v855, 8.507059e+37
    %v857 = vand.u32 %v845, 2147483648
    %v858 = vor.u32 1.1754944e-38, %v857
    %v859 = vsel %vm856, %v858, %v854
    %v860 = vmul.f32 1.0, %v859
    %v861 = vadd.f32 %v839, %v93
    %863 = vrot.lane.b32.xlu0 %v861, 64
    %v864 = vpop.permute.xlu0 %863
    %v866 = vmul.f32 %v860, %v864
    %868 = vrot.lane.b32.xlu0 %v866, 64
    %v869 = vpop.permute.xlu0 %868
    %v871 = vadd.f32 %v820, %v869
    %v872 = vtanh.pop %v871
    %v873 = vsub.f32 1.0, %v860
    %875 = vrot.lane.b32.xlu0 %v872, 96
    %v876 = vpop.permute.xlu0 %875
    %v878 = vmul.f32 %v873, %v876
    %v879 = vmul.f32 %v860, %v728
    %v880 = vadd.f32 %v878, %v879
    %882 = vrot.lane.b32.xlu0 %v880, 96
    %v883 = vpop.permute.xlu0 %882
    %v884 = vsel %vm48, %v883, 0
    %886 = vmatpush.msra.mxu0 0.0
    %887 = vmatpush.msra.mxu0 0.0
    %888 = vmatpush.msra.mxu0 0.0
    %889 = vmatpush.msra.mxu0 0.0
    %890 = vmatpush.msra.mxu0 0.0
    %891 = vmatpush.msra.mxu0 0.0
    %892 = vmatpush.msra.mxu0 0.0
    %893 = vmatpush.msra.mxu0 0.0
    %894 = vmatpush.msra.mxu0 0.0
    %895 = vmatpush.msra.mxu0 0.0
    %896 = vmatpush.msra.mxu0 0.0
    %897 = vmatpush.msra.mxu0 0.0
    %898 = vmatpush.msra.mxu0 %v118
    %899 = vmatpush.msra.mxu0 %v117
    %900 = vmatpush.msra.mxu0 %v116
    %901 = vmatpush.msra.mxu0 %v115
    %902 = vmatmul.f32.gmra.mxu0 %v884
    %v903 = vpop.f32.mrf.mxu0
    %v904 = vadd.f32 %v41, %v903
    %905 = vdwg.mxu0
    %907 = vrot.lane.b32.xlu0 %v818, 96
    %v908 = vpop.permute.xlu0 %907
    %v909 = vsel %vm48, %v908, 0
    %911 = vmatpush.msra.mxu0 0.0
    %912 = vmatpush.msra.mxu0 0.0
    %913 = vmatpush.msra.mxu0 0.0
    %914 = vmatpush.msra.mxu0 0.0
    %915 = vmatpush.msra.mxu0 0.0
    %916 = vmatpush.msra.mxu0 0.0
    %917 = vmatpush.msra.mxu0 0.0
    %918 = vmatpush.msra.mxu0 0.0
    %919 = vmatpush.msra.mxu0 0.0
    %920 = vmatpush.msra.mxu0 0.0
    %921 = vmatpush.msra.mxu0 0.0
    %922 = vmatpush.msra.mxu0 0.0
    %923 = vmatpush.msra.mxu0 %v147
    %924 = vmatpush.msra.mxu0 %v146
    %925 = vmatpush.msra.mxu0 %v145
    %926 = vmatpush.msra.mxu0 %v144
    %927 = vmatmul.f32.gmra.mxu0 %v909
    %v928 = vpop.f32.mrf.mxu0
    %v929 = vadd.f32 0.0, %v928
    %930 = vdwg.mxu0
    %v931 = vadd.f32 %v904, %v929
    %v932 = vxor.u32 %v931, 2147483648
    %v933 = vmul.f32 %v932, 1.442695
    %v934 = vpow.pop %v933
    %v935 = vadd.f32 %v934, 1.0
    %v936 = vrcp.pop %v935
    %v937 = vmul.f32 %v935, %v936
    %v938 = vsub.f32 1.0, %v937
    %v939 = vmul.f32 %v936, %v938
    %v940 = vadd.f32 %v936, %v939
    %vm941 = vweird.f32 %v935
    %vm942 = vweird.f32 %v936
    %vm943 = vmor %vm941, %vm942
    %v944 = vsel %vm943, %v936, %v940
    %v945 = vand.u32 2147483647, %v935
    %vm946 = vcmp.eq.f32.partialorder %v945, 8.507059e+37
    %v947 = vand.u32 %v935, 2147483648
    %v948 = vor.u32 1.1754944e-38, %v947
    %v949 = vsel %vm946, %v948, %v944
    %v950 = vmul.f32 1.0, %v949
    %v951 = vadd.f32 %v929, %v189
    %953 = vrot.lane.b32.xlu0 %v951, 64
    %v954 = vpop.permute.xlu0 %953
    %v956 = vmul.f32 %v950, %v954
    %958 = vrot.lane.b32.xlu0 %v956, 64
    %v959 = vpop.permute.xlu0 %958
    %v961 = vadd.f32 %v904, %v959
    %v962 = vtanh.pop %v961
    %v963 = vsub.f32 1.0, %v950
    %965 = vrot.lane.b32.xlu0 %v962, 96
    %v966 = vpop.permute.xlu0 %965
    %v968 = vmul.f32 %v963, %v966
    %v969 = vmul.f32 %v950, %v818
    %v970 = vadd.f32 %v968, %v969
    %s971 = scalar_lea.vmem %s0, 12
    %v972 = vld [vmem:[%s971] sm:$0x3]
    %973 = vmatpush.msra.mxu0 0.0
    %974 = vmatpush.msra.mxu0 0.0
    %975 = vmatpush.msra.mxu0 0.0
    %976 = vmatpush.msra.mxu0 0.0
    %977 = vmatpush.msra.mxu0 0.0
    %978 = vmatpush.msra.mxu0 0.0
    %979 = vmatpush.msra.mxu0 0.0
    %980 = vmatpush.msra.mxu0 0.0
    %981 = vmatpush.msra.mxu0 0.0
    %982 = vmatpush.msra.mxu0 0.0
    %983 = vmatpush.msra.mxu0 0.0
    %984 = vmatpush.msra.mxu0 0.0
    %985 = vmatpush.msra.mxu0 %v47
    %986 = vmatpush.msra.mxu0 %v46
    %987 = vmatpush.msra.mxu0 %v45
    %988 = vmatpush.msra.mxu0 %v44
    %989 = vmatmul.f32.gmra.mxu0 %v884
    %v990 = vpop.f32.mrf.mxu0
    %v991 = vadd.f32 0.0, %v990
    %992 = vdwg.mxu0
    %v993 = vadd.f32 %v972, %v991
    %v994 = vxor.u32 %v993, 2147483648
    %v995 = vmul.f32 %v994, 1.442695
    %v996 = vpow.pop %v995
    %v997 = vadd.f32 %v996, 1.0
    %v998 = vrcp.pop %v997
    %v999 = vmul.f32 %v997, %v998
    %v1000 = vsub.f32 1.0, %v999
    %v1001 = vmul.f32 %v998, %v1000
    %v1002 = vadd.f32 %v998, %v1001
    %vm1003 = vweird.f32 %v997
    %vm1004 = vweird.f32 %v998
    %vm1005 = vmor %vm1003, %vm1004
    %v1006 = vsel %vm1005, %v998, %v1002
    %v1007 = vand.u32 2147483647, %v997
    %vm1008 = vcmp.eq.f32.partialorder %v1007, 8.507059e+37
    %v1009 = vand.u32 %v997, 2147483648
    %v1010 = vor.u32 1.1754944e-38, %v1009
    %v1011 = vsel %vm1008, %v1010, %v1006
    %v1012 = vmul.f32 1.0, %v1011
    %v1013 = vadd.f32 %v991, %v93
    %1015 = vrot.lane.b32.xlu0 %v1013, 64
    %v1016 = vpop.permute.xlu0 %1015
    %v1018 = vmul.f32 %v1012, %v1016
    %1020 = vrot.lane.b32.xlu0 %v1018, 64
    %v1021 = vpop.permute.xlu0 %1020
    %v1023 = vadd.f32 %v972, %v1021
    %v1024 = vtanh.pop %v1023
    %v1025 = vsub.f32 1.0, %v1012
    %1027 = vrot.lane.b32.xlu0 %v1024, 96
    %v1028 = vpop.permute.xlu0 %1027
    %v1030 = vmul.f32 %v1025, %v1028
    %v1031 = vmul.f32 %v1012, %v880
    %v1032 = vadd.f32 %v1030, %v1031
    %1034 = vrot.lane.b32.xlu0 %v1032, 96
    %v1035 = vpop.permute.xlu0 %1034
    %v1036 = vsel %vm48, %v1035, 0
    %1038 = vmatpush.msra.mxu0 0.0
    %1039 = vmatpush.msra.mxu0 0.0
    %1040 = vmatpush.msra.mxu0 0.0
    %1041 = vmatpush.msra.mxu0 0.0
    %1042 = vmatpush.msra.mxu0 0.0
    %1043 = vmatpush.msra.mxu0 0.0
    %1044 = vmatpush.msra.mxu0 0.0
    %1045 = vmatpush.msra.mxu0 0.0
    %1046 = vmatpush.msra.mxu0 0.0
    %1047 = vmatpush.msra.mxu0 0.0
    %1048 = vmatpush.msra.mxu0 0.0
    %1049 = vmatpush.msra.mxu0 0.0
    %1050 = vmatpush.msra.mxu0 %v118
    %1051 = vmatpush.msra.mxu0 %v117
    %1052 = vmatpush.msra.mxu0 %v116
    %1053 = vmatpush.msra.mxu0 %v115
    %1054 = vmatmul.f32.gmra.mxu0 %v1036
    %v1055 = vpop.f32.mrf.mxu0
    %v1056 = vadd.f32 %v41, %v1055
    %1057 = vdwg.mxu0
    %1059 = vrot.lane.b32.xlu0 %v970, 96
    %v1060 = vpop.permute.xlu0 %1059
    %v1061 = vsel %vm48, %v1060, 0
    %1063 = vmatpush.msra.mxu0 0.0
    %1064 = vmatpush.msra.mxu0 0.0
    %1065 = vmatpush.msra.mxu0 0.0
    %1066 = vmatpush.msra.mxu0 0.0
    %1067 = vmatpush.msra.mxu0 0.0
    %1068 = vmatpush.msra.mxu0 0.0
    %1069 = vmatpush.msra.mxu0 0.0
    %1070 = vmatpush.msra.mxu0 0.0
    %1071 = vmatpush.msra.mxu0 0.0
    %1072 = vmatpush.msra.mxu0 0.0
    %1073 = vmatpush.msra.mxu0 0.0
    %1074 = vmatpush.msra.mxu0 0.0
    %1075 = vmatpush.msra.mxu0 %v147
    %1076 = vmatpush.msra.mxu0 %v146
    %1077 = vmatpush.msra.mxu0 %v145
    %1078 = vmatpush.msra.mxu0 %v144
    %1079 = vmatmul.f32.gmra.mxu0 %v1061
    %v1080 = vpop.f32.mrf.mxu0
    %v1081 = vadd.f32 0.0, %v1080
    %1082 = vdwg.mxu0
    %v1083 = vadd.f32 %v1056, %v1081
    %v1084 = vxor.u32 %v1083, 2147483648
    %v1085 = vmul.f32 %v1084, 1.442695
    %v1086 = vpow.pop %v1085
    %v1087 = vadd.f32 %v1086, 1.0
    %v1088 = vrcp.pop %v1087
    %v1089 = vmul.f32 %v1087, %v1088
    %v1090 = vsub.f32 1.0, %v1089
    %v1091 = vmul.f32 %v1088, %v1090
    %v1092 = vadd.f32 %v1088, %v1091
    %vm1093 = vweird.f32 %v1087
    %vm1094 = vweird.f32 %v1088
    %vm1095 = vmor %vm1093, %vm1094
    %v1096 = vsel %vm1095, %v1088, %v1092
    %v1097 = vand.u32 2147483647, %v1087
    %vm1098 = vcmp.eq.f32.partialorder %v1097, 8.507059e+37
    %v1099 = vand.u32 %v1087, 2147483648
    %v1100 = vor.u32 1.1754944e-38, %v1099
    %v1101 = vsel %vm1098, %v1100, %v1096
    %v1102 = vmul.f32 1.0, %v1101
    %v1103 = vadd.f32 %v1081, %v189
    %1105 = vrot.lane.b32.xlu0 %v1103, 64
    %v1106 = vpop.permute.xlu0 %1105
    %v1108 = vmul.f32 %v1102, %v1106
    %1110 = vrot.lane.b32.xlu0 %v1108, 64
    %v1111 = vpop.permute.xlu0 %1110
    %v1113 = vadd.f32 %v1056, %v1111
    %v1114 = vtanh.pop %v1113
    %v1115 = vsub.f32 1.0, %v1102
    %1117 = vrot.lane.b32.xlu0 %v1114, 96
    %v1118 = vpop.permute.xlu0 %1117
    %v1120 = vmul.f32 %v1115, %v1118
    %v1121 = vmul.f32 %v1102, %v970
    %v1122 = vadd.f32 %v1120, %v1121
    %1124 = vrot.lane.b32.xlu0 %v1122, 96
    %v1125 = vpop.permute.xlu0 %1124
    %vm1127 = vcmask 254977
    %1128 = vst.msk [vmem:[#allocation2 - $0x1] sm:$0x2] %vm1127, %v1125
    %s1129 = scalar_lea.vmem %s0, 14
    %v1130 = vld [vmem:[%s1129] sm:$0x3]
    %v1131 = vld [vmem:[%s1] sm:$0xff]
    %v1132 = vld [vmem:[%s1 + $0x8] sm:$0xff]
    %v1133 = vld [vmem:[%s1 + $0x10] sm:$0xff]
    %v1134 = vld [vmem:[%s1 + $0x18] sm:$0xff]
    %1135 = vmatpush.msra.mxu0 0.0
    %1136 = vmatpush.msra.mxu0 0.0
    %1137 = vmatpush.msra.mxu0 0.0
    %1138 = vmatpush.msra.mxu0 0.0
    %1139 = vmatpush.msra.mxu0 0.0
    %1140 = vmatpush.msra.mxu0 0.0
    %1141 = vmatpush.msra.mxu0 0.0
    %1142 = vmatpush.msra.mxu0 0.0
    %1143 = vmatpush.msra.mxu0 0.0
    %1144 = vmatpush.msra.mxu0 0.0
    %1145 = vmatpush.msra.mxu0 0.0
    %1146 = vmatpush.msra.mxu0 0.0
    %1147 = vmatpush.msra.mxu0 %v1134
    %1148 = vmatpush.msra.mxu0 %v1133
    %1149 = vmatpush.msra.mxu0 %v1132
    %1150 = vmatpush.msra.mxu0 %v1131
    %1151 = vmatmul.f32.gmra.mxu0 %v1036
    %v1152 = vpop.f32.mrf.mxu0
    %v1153 = vadd.f32 0.0, %v1152
    %1154 = vdwg.mxu0
    %v1155 = vadd.f32 %v1130, %v1153
    %v1156 = vxor.u32 %v1155, 2147483648
    %v1157 = vmul.f32 %v1156, 1.442695
    %v1158 = vpow.pop %v1157
    %v1159 = vadd.f32 %v1158, 1.0
    %v1160 = vrcp.pop %v1159
    %v1161 = vmul.f32 %v1159, %v1160
    %v1162 = vsub.f32 1.0, %v1161
    %v1163 = vmul.f32 %v1160, %v1162
    %v1164 = vadd.f32 %v1160, %v1163
    %vm1165 = vweird.f32 %v1159
    %vm1166 = vweird.f32 %v1160
    %vm1167 = vmor %vm1165, %vm1166
    %v1168 = vsel %vm1167, %v1160, %v1164
    %v1169 = vand.u32 2147483647, %v1159
    %vm1170 = vcmp.eq.f32.partialorder %v1169, 8.507059e+37
    %v1171 = vand.u32 %v1159, 2147483648
    %v1172 = vor.u32 1.1754944e-38, %v1171
    %v1173 = vsel %vm1170, %v1172, %v1168
    %v1174 = vmul.f32 1.0, %v1173
    %v1175 = vadd.f32 %v1153, %v93
    %1177 = vrot.lane.b32.xlu0 %v1175, 64
    %v1178 = vpop.permute.xlu0 %1177
    %v1180 = vmul.f32 %v1174, %v1178
    %1182 = vrot.lane.b32.xlu0 %v1180, 64
    %v1183 = vpop.permute.xlu0 %1182
    %v1185 = vadd.f32 %v1130, %v1183
    %v1186 = vtanh.pop %v1185
    %v1187 = vsub.f32 1.0, %v1174
    %1189 = vrot.lane.b32.xlu0 %v1186, 96
    %v1190 = vpop.permute.xlu0 %1189
    %v1192 = vmul.f32 %v1187, %v1190
    %v1193 = vmul.f32 %v1174, %v1032
    %v1194 = vadd.f32 %v1192, %v1193
    %v1195 = vld [vmem:[%s3] sm:$0xff]
    %v1196 = vld [vmem:[%s3 + $0x8] sm:$0xff]
    %v1197 = vld [vmem:[%s3 + $0x10] sm:$0xff]
    %v1198 = vld [vmem:[%s3 + $0x18] sm:$0xff]
    %1200 = vrot.lane.b32.xlu0 %v1194, 96
    %v1201 = vpop.permute.xlu0 %1200
    %v1202 = vsel %vm48, %v1201, 0
    %1204 = vmatpush.msra.mxu0 0.0
    %1205 = vmatpush.msra.mxu0 0.0
    %1206 = vmatpush.msra.mxu0 0.0
    %1207 = vmatpush.msra.mxu0 0.0
    %1208 = vmatpush.msra.mxu0 0.0
    %1209 = vmatpush.msra.mxu0 0.0
    %1210 = vmatpush.msra.mxu0 0.0
    %1211 = vmatpush.msra.mxu0 0.0
    %1212 = vmatpush.msra.mxu0 0.0
    %1213 = vmatpush.msra.mxu0 0.0
    %1214 = vmatpush.msra.mxu0 0.0
    %1215 = vmatpush.msra.mxu0 0.0
    %1216 = vmatpush.msra.mxu0 %v1198
    %1217 = vmatpush.msra.mxu0 %v1197
    %1218 = vmatpush.msra.mxu0 %v1196
    %1219 = vmatpush.msra.mxu0 %v1195
    %1220 = vmatmul.f32.gmra.mxu0 %v1202
    %v1221 = vpop.f32.mrf.mxu0
    %v1222 = vadd.f32 %v41, %v1221
    %1223 = vdwg.mxu0
    %v1224 = vld [vmem:[%s5] sm:$0xff]
    %v1225 = vld [vmem:[%s5 + $0x8] sm:$0xff]
    %v1226 = vld [vmem:[%s5 + $0x10] sm:$0xff]
    %v1227 = vld [vmem:[%s5 + $0x18] sm:$0xff]
    %v1228 = vsel %vm48, %v1125, 0
    %1230 = vmatpush.msra.mxu0 0.0
    %1231 = vmatpush.msra.mxu0 0.0
    %1232 = vmatpush.msra.mxu0 0.0
    %1233 = vmatpush.msra.mxu0 0.0
    %1234 = vmatpush.msra.mxu0 0.0
    %1235 = vmatpush.msra.mxu0 0.0
    %1236 = vmatpush.msra.mxu0 0.0
    %1237 = vmatpush.msra.mxu0 0.0
    %1238 = vmatpush.msra.mxu0 0.0
    %1239 = vmatpush.msra.mxu0 0.0
    %1240 = vmatpush.msra.mxu0 0.0
    %1241 = vmatpush.msra.mxu0 0.0
    %1242 = vmatpush.msra.mxu0 %v1227
    %1243 = vmatpush.msra.mxu0 %v1226
    %1244 = vmatpush.msra.mxu0 %v1225
    %1245 = vmatpush.msra.mxu0 %v1224
    %1246 = vmatmul.f32.gmra.mxu0 %v1228
    %v1247 = vpop.f32.mrf.mxu0
    %v1248 = vadd.f32 0.0, %v1247
    %1249 = vdwg.mxu0
    %v1250 = vadd.f32 %v1222, %v1248
    %v1251 = vxor.u32 %v1250, 2147483648
    %v1252 = vmul.f32 %v1251, 1.442695
    %v1253 = vpow.pop %v1252
    %v1254 = vadd.f32 %v1253, 1.0
    %v1255 = vrcp.pop %v1254
    %v1256 = vmul.f32 %v1254, %v1255
    %v1257 = vsub.f32 1.0, %v1256
    %v1258 = vmul.f32 %v1255, %v1257
    %v1259 = vadd.f32 %v1255, %v1258
    %vm1260 = vweird.f32 %v1254
    %vm1261 = vweird.f32 %v1255
    %vm1262 = vmor %vm1260, %vm1261
    %v1263 = vsel %vm1262, %v1255, %v1259
    %v1264 = vand.u32 2147483647, %v1254
    %vm1265 = vcmp.eq.f32.partialorder %v1264, 8.507059e+37
    %v1266 = vand.u32 %v1254, 2147483648
    %v1267 = vor.u32 1.1754944e-38, %v1266
    %v1268 = vsel %vm1265, %v1267, %v1263
    %v1269 = vmul.f32 1.0, %v1268
    %v1270 = vadd.f32 %v1248, %v189
    %1272 = vrot.lane.b32.xlu0 %v1270, 64
    %v1273 = vpop.permute.xlu0 %1272
    %v1275 = vmul.f32 %v1269, %v1273
    %1277 = vrot.lane.b32.xlu0 %v1275, 64
    %v1278 = vpop.permute.xlu0 %1277
    %v1280 = vadd.f32 %v1222, %v1278
    %v1281 = vtanh.pop %v1280
    %v1282 = vsub.f32 1.0, %v1269
    %1284 = vrot.lane.b32.xlu0 %v1281, 96
    %v1285 = vpop.permute.xlu0 %1284
    %v1287 = vmul.f32 %v1282, %v1285
    %v1288 = vmul.f32 %v1269, %v1122
    %v1289 = vadd.f32 %v1287, %v1288
    %1291 = vrot.lane.b32.xlu0 %v1289, 96
    %v1292 = vpop.permute.xlu0 %1291
    %1294 = vst.msk [vmem:[#allocation2] sm:$0x2] %vm1127, %v1292
    %v1295 = vld [vmem:[#allocation2] sm:$0x3]
    %v1296 = vld [vmem:[%s7] sm:$0xff]
    %v1297 = vld [vmem:[%s7 + $0x8] sm:$0xff]
    %v1298 = vld [vmem:[%s7 + $0x10] sm:$0xff]
    %v1299 = vld [vmem:[%s7 + $0x18] sm:$0xff]
    %v1300 = vld [vmem:[%s8] sm:$0x1]
    %v1302 = vperm.slane %v1300, 0
    %v1305 = vsel %vm48, %v1295, 0
    %1307 = vmatpush.msra.mxu0 0.0
    %1308 = vmatpush.msra.mxu0 0.0
    %1309 = vmatpush.msra.mxu0 0.0
    %1310 = vmatpush.msra.mxu0 0.0
    %1311 = vmatpush.msra.mxu0 0.0
    %1312 = vmatpush.msra.mxu0 0.0
    %1313 = vmatpush.msra.mxu0 0.0
    %1314 = vmatpush.msra.mxu0 0.0
    %1315 = vmatpush.msra.mxu0 0.0
    %1316 = vmatpush.msra.mxu0 0.0
    %1317 = vmatpush.msra.mxu0 0.0
    %1318 = vmatpush.msra.mxu0 0.0
    %1319 = vmatpush.msra.mxu0 %v1299
    %1320 = vmatpush.msra.mxu0 %v1298
    %1321 = vmatpush.msra.mxu0 %v1297
    %1322 = vmatpush.msra.mxu0 %v1296
    %1323 = vmatmul.f32.gmra.mxu0 %v1305
    %v1324 = vpop.f32.mrf.mxu0
    %v1325 = vadd.f32 %v1302, %v1324
    %1326 = vdwg.mxu0
    %vm1327 = vcmask 25600
    %1328 = vst.msk [vmem:[#allocation3] sm:$0x3] %vm1327, %v1325
    // Predicated region
    $region38: #{model_forward.1} parent=1 // pred_check
      _
    $region39: #{model_forward.1} parent=1 // pred_check_branch
      %1330 = sbr.rel (0) target = $region41
    $region40: #{model_forward.1} parent=1 // pred_region
      %1332 = vsyncadd [#allocation4], 0
      %s1334 = sshll.u32 [#allocation3], 4
      %s1335 = int_to_ptr.vmem [resolvable:$true] %s1334
      %s1336 = sshll.u32 %s9, 4
      %s1337 = int_to_ptr.hbm [resolvable:$true] %s1336
      %1339 = dma.vmem_to_hbm [thread:$0]  %s1335, 32, %s1337, [#allocation4]
    $region41: #{model_forward.1} parent=1 // pred_fallthru
      _
    // Predicated region
    $region42: #{model_forward.1} parent=1 // pred_check
      _
    $region43: #{model_forward.1} parent=1 // pred_check_branch
      %1341 = sbr.rel (0) target = $region45
    $region44: #{model_forward.1} parent=1 // pred_region
      %1343 = dma.done [#allocation4], 32
    $region45: #{model_forward.1} parent=1 // pred_fallthru
      _
    %1344 = vsyncpa [#allocation4], 1

</llo_original>
